<compile_context>
chip_gen: v5e
topology: v5e:2x2
jax: 0.10.0
libtpu: 0.0.40
codegen_flags: <defaults>
</compile_context>

<pallas_src>
import functools
import math

import numpy as np
import jax
import jax.numpy as jnp
from jax.experimental import pallas as pl
from jax.experimental.pallas import tpu as pltpu

D_MODEL_F = 19   # frame feature dim (d_frame / d_model_o)
D_MODEL_S = 51   # sentence feature dim (d_word_vec / d_model_i)
END_THRE = 0.5
_NEG_INF = -1e9


# ----------------------------------------------------------------------------
# In-kernel helpers
# ----------------------------------------------------------------------------
def _ln(x, w, b, eps=1e-5):
    """Fused LayerNorm (PyTorch default eps=1e-5); rsqrt hits the EUP slot."""
    mu = jnp.mean(x, axis=-1, keepdims=True)
    xc = x - mu
    var = jnp.mean(xc * xc, axis=-1, keepdims=True)
    return xc * jax.lax.rsqrt(var + eps) * w + b


def _softmax_rows(s):
    """Row softmax; divide replaced by EUP reciprocal."""
    s = s - jnp.max(s, axis=-1, keepdims=True)
    e = jnp.exp(s)
    return e * pl.reciprocal(jnp.sum(e, axis=-1, keepdims=True), approx=True)


# ----------------------------------------------------------------------------
# Fused encoder layer kernel: QKV proj -> MHA -> out proj -> res+LN -> FFN -> res+LN
# ----------------------------------------------------------------------------
def _encoder_layer_kernel(x_ref, m_ref, wqkv_ref, bqkv_ref, wo_ref, bo_ref,
                          ln1w_ref, ln1b_ref, w1_ref, b1_ref, w2_ref, b2_ref,
                          ln2w_ref, ln2b_ref, o_ref, *, n_head, d_k, d_v, batch):
    BL, D = x_ref.shape
    B = batch
    L = BL // B
    hdk = n_head * d_k
    hdv = n_head * d_v
    scale = 1.0 / math.sqrt(d_k)

    mask = m_ref[...]                       # (B, L) key-padding mask
    wqkv = wqkv_ref[...]
    bqkv = bqkv_ref[...]
    wo = wo_ref[...]
    bo = bo_ref[...]
    w1 = w1_ref[...]
    b1 = b1_ref[...]
    w2 = w2_ref[...]
    b2 = b2_ref[...]
    ln1w = ln1w_ref[...]
    ln1b = ln1b_ref[...]
    ln2w = ln2w_ref[...]
    ln2b = ln2b_ref[...]

    for b in range(B):                      # static unroll (tiny batch)
        x_b = x_ref[b * L:(b + 1) * L, :]                               # (L, D)
        m_b = mask[b:b + 1, :]                                          # (1, L)
        qkv = jnp.dot(x_b, wqkv, preferred_element_type=jnp.float32) + bqkv
        q_b = qkv[:, :hdk]
        k_b = qkv[:, hdk:2 * hdk]
        v_b = qkv[:, 2 * hdk:2 * hdk + hdv]
        o_b = jnp.zeros((L, D), jnp.float32)
        for h in range(n_head):             # static unroll; heads via lane slices
            q_h = q_b[:, h * d_k:(h + 1) * d_k]
            k_h = k_b[:, h * d_k:(h + 1) * d_k]
            v_h = v_b[:, h * d_v:(h + 1) * d_v]
            s = jax.lax.dot_general(q_h, k_h, (((1,), (1,)), ((), ())),
                                    preferred_element_type=jnp.float32) * scale
            s = jnp.where(m_b > 0.5, s, _NEG_INF)
            p = _softmax_rows(s)
            ctx = jnp.dot(p, v_h, preferred_element_type=jnp.float32)
            # concat-free head merge: sum of per-head slices of the out-proj
            o_b = o_b + jnp.dot(ctx, wo[h * d_v:(h + 1) * d_v, :],
                                preferred_element_type=jnp.float32)
        o_b = o_b + bo
        h1 = _ln(o_b + x_b, ln1w, ln1b)
        ffn = jnp.dot(
            jnp.maximum(jnp.dot(h1, w1, preferred_element_type=jnp.float32) + b1,
                        0.0),
            w2, preferred_element_type=jnp.float32) + b2
        out_b = _ln(ffn + h1, ln2w, ln2b)
        o_ref[b * L:(b + 1) * L, :] = out_b


# ----------------------------------------------------------------------------
# Fused autoregressive decoder kernel: grid = (videomaxlen,), "arbitrary".
#   step 0: copy trg into the resident output block, build K/V caches in VMEM.
#   every step: PE add, cross-attention, FFN, trg_word_prj, residual,
#               softmax/softmax/sigmoid split, write frame index+1 in place.
# ----------------------------------------------------------------------------
def _decoder_kernel(trg_in_ref, enc_ref, pos_ref, mask_ref,
                    cwq_ref, cbq_ref, cwk_ref, cbk_ref,
                    cwv_ref, cbv_ref, cwo_ref, cbo_ref,
                    clnw_ref, clnb_ref,
                    fw1_ref, fb1_ref, fw2_ref, fb2_ref,
                    flnw_ref, flnb_ref, prj_ref,
                    trg_out_ref, attn_ref,
                    k_cache, v_cache,
                    *, n_head, d_k, d_v, n_layers, batch, rows_per_b, d_frame):
    index = pl.program_id(0)
    B = batch
    H = n_head
    hdk = H * d_k
    hdv = H * d_v
    D2 = pos_ref.shape[1]                   # 2 * d_frame
    d_enc = enc_ref.shape[1]
    Ls = enc_ref.shape[0] // B
    d_inner = fw2_ref.shape[0] // n_layers
    scale = 1.0 / math.sqrt(d_k)

    # ---- step 0: init resident trg buffer + step-invariant K/V caches -------
    @pl.when(index == 0)
    def _init():
        trg_out_ref[...] = trg_in_ref[...]
        for l in range(n_layers):
            wk = cwk_ref[l * d_enc:(l + 1) * d_enc, :]
            bk = cbk_ref[l:l + 1, :]
            wv = cwv_ref[l * d_enc:(l + 1) * d_enc, :]
            bv = cbv_ref[l:l + 1, :]
            for b in range(B):
                e_b = enc_ref[b * Ls:(b + 1) * Ls, :]
                r0 = (l * B + b) * Ls
                k_cache[r0:r0 + Ls, :] = (
                    jnp.dot(e_b, wk, preferred_element_type=jnp.float32) + bk)
                v_cache[r0:r0 + Ls, :] = (
                    jnp.dot(e_b, wv, preferred_element_type=jnp.float32) + bv)

    pos_row = pos_ref[pl.ds(index, 1), :]   # (1, D2): zeros | PE  (additive concat)
    mask = mask_ref[...]                    # (B, Ls)
    prj = prj_ref[...]                      # (D2, D2), cols >= d_frame are zero
    lane = jax.lax.broadcasted_iota(jnp.int32, (1, D2), 1)
    seg1 = lane < 9
    seg2 = (lane >= 9) & (lane < 18)
    seg3 = (lane >= 18) & (lane < d_frame)

    # per-layer weight views (values in VMEM)
    lw = []
    for l in range(n_layers):
        lw.append(dict(
            wq=cwq_ref[l * D2:(l + 1) * D2, :],
            bq=cbq_ref[l:l + 1, :],
            wo=cwo_ref[l * hdv:(l + 1) * hdv, :],
            bo=cbo_ref[l:l + 1, :],
            ln1w=clnw_ref[l:l + 1, :],
            ln1b=clnb_ref[l:l + 1, :],
            w1=fw1_ref[l * D2:(l + 1) * D2, :],
            b1=fb1_ref[l:l + 1, :],
            w2=fw2_ref[l * d_inner:(l + 1) * d_inner, :],
            b2=fb2_ref[l:l + 1, :],
            ln2w=flnw_ref[l:l + 1, :],
            ln2b=flnb_ref[l:l + 1, :],
        ))

    for b in range(B):                      # static unroll
        row = b * rows_per_b + index
        residual = trg_out_ref[pl.ds(row, 1), :]     # (1, D2): frame | zeros
        x = residual + pos_row                       # [frame | PE]
        m_b = mask[b:b + 1, :]                       # (1, Ls)
        for l in range(n_layers):
            w = lw[l]
            q = jnp.dot(x, w["wq"], preferred_element_type=jnp.float32) + w["bq"]
            r0 = (l * B + b) * Ls
            k_all = k_cache[r0:r0 + Ls, :]
            v_all = v_cache[r0:r0 + Ls, :]
            o = jnp.zeros((1, D2), jnp.float32)
            for h in range(H):
                q_h = q[:, h * d_k:(h + 1) * d_k]                     # (1, dk)
                k_h = k_all[:, h * d_k:(h + 1) * d_k]                 # (Ls, dk)
                v_h = v_all[:, h * d_v:(h + 1) * d_v]                 # (Ls, dv)
                s = jax.lax.dot_general(q_h, k_h, (((1,), (1,)), ((), ())),
                                        preferred_element_type=jnp.float32) * scale
                s = jnp.where(m_b > 0.5, s, _NEG_INF)
                p = _softmax_rows(s)                                  # (1, Ls)
                ctx = jnp.dot(p, v_h, preferred_element_type=jnp.float32)
                o = o + jnp.dot(ctx, w["wo"][h * d_v:(h + 1) * d_v, :],
                                preferred_element_type=jnp.float32)
                if l == n_layers - 1:
                    # record last-layer cross-attention probs for this step
                    attn_ref[b * H + h:b * H + h + 1, :] = p
            o = o + w["bo"]
            h1 = _ln(o + x, w["ln1w"], w["ln1b"])
            ffn = jnp.dot(
                jnp.maximum(
                    jnp.dot(h1, w["w1"], preferred_element_type=jnp.float32)
                    + w["b1"], 0.0),
                w["w2"], preferred_element_type=jnp.float32) + w["b2"]
            x = _ln(ffn + h1, w["ln2w"], w["ln2b"])

        dec = jnp.dot(x, prj, preferred_element_type=jnp.float32) + residual

        def _seg_softmax(seg, vals):
            z = jnp.where(seg, vals, _NEG_INF)
            z = z - jnp.max(z, axis=-1, keepdims=True)
            e = jnp.where(seg, jnp.exp(z), 0.0)
            return e * pl.reciprocal(jnp.sum(e, axis=-1, keepdims=True),
                                     approx=True)

        p1 = _seg_softmax(seg1, dec)
        p2 = _seg_softmax(seg2, dec)
        sg = jax.nn.sigmoid(dec)
        dec2 = jnp.where(seg1, p1,
                         jnp.where(seg2, p2,
                                   jnp.where(seg3, sg, jnp.zeros_like(dec))))
        trg_out_ref[pl.ds(row + 1, 1), :] = dec2      # in-place autoregressive write


# ----------------------------------------------------------------------------
# Plain-JAX glue (masks, PE tables, parameter init)
# ----------------------------------------------------------------------------
def sinusoid_table(n_position, d_hid):
    def angle_vec(pos):
        return [pos / np.power(10000, 2 * (j // 2) / d_hid) for j in range(d_hid)]

    tab = np.array([angle_vec(p) for p in range(n_position)], dtype=np.float64)
    tab[:, 0::2] = np.sin(tab[:, 0::2])
    tab[:, 1::2] = np.cos(tab[:, 1::2])
    return jnp.asarray(tab, dtype=jnp.float32)


def get_pad_mask(seq, seq_len):
    B, L = seq.shape[0], seq.shape[1]
    return (jnp.arange(L)[None, :] < seq_len[:, None])[:, None, :]


def get_subsequent_mask(trg_seq):
    len_s = trg_seq.shape[1]
    return jnp.tril(jnp.ones((1, len_s, len_s), dtype=bool))


def xavier(key, shape):
    limit = math.sqrt(6.0 / (shape[0] + shape[1]))
    return jax.random.uniform(key, shape, jnp.float32, -limit, limit)


def init_params(key, *, n_head, d_k, d_v, d_inner, n_layers_enc, n_layers_dec,
                n_position):
    d_enc = 2 * D_MODEL_S   # 102  (src features concat positional encoding)
    d_dec = 2 * D_MODEL_F   # 38   (trg features concat positional encoding)
    keys = iter(jax.random.split(key, 128))

    def mha_params(d_q, d_kv, d_out):
        return {
            "wq": xavier(next(keys), (d_q, n_head * d_k)),
            "bq": jnp.zeros((n_head * d_k,), jnp.float32),
            "wk": xavier(next(keys), (d_kv, n_head * d_k)),
            "bk": jnp.zeros((n_head * d_k,), jnp.float32),
            "wv": xavier(next(keys), (d_kv, n_head * d_v)),
            "bv": jnp.zeros((n_head * d_v,), jnp.float32),
            "wo": xavier(next(keys), (n_head * d_v, d_out)),
            "bo": jnp.zeros((d_out,), jnp.float32),
            "ln_w": jnp.ones((d_out,), jnp.float32),
            "ln_b": jnp.zeros((d_out,), jnp.float32),
        }

    def ffn_params(d_model):
        return {
            "w1": xavier(next(keys), (d_model, d_inner)),
            "b1": jnp.zeros((d_inner,), jnp.float32),
            "w2": xavier(next(keys), (d_inner, d_model)),
            "b2": jnp.zeros((d_model,), jnp.float32),
            "ln_w": jnp.ones((d_model,), jnp.float32),
            "ln_b": jnp.zeros((d_model,), jnp.float32),
        }

    return {
        "enc_layers": [
            {"attn": mha_params(d_enc, d_enc, d_enc), "ffn": ffn_params(d_enc)}
            for _ in range(n_layers_enc)
        ],
        "dec_layers": [
            {"cross": mha_params(d_dec, d_enc, d_dec), "ffn": ffn_params(d_dec)}
            for _ in range(n_layers_dec)
        ],
        "trg_word_prj": xavier(next(keys), (d_dec, D_MODEL_F)),  # bias=False
        "pos_table_enc": sinusoid_table(n_position, D_MODEL_S),
        "pos_table_dec": sinusoid_table(n_position, D_MODEL_F),
    }


# ----------------------------------------------------------------------------
# Model forward (dropout = identity: deterministic / eval semantics)
# ----------------------------------------------------------------------------
def encoder_forward(params, src_seq, labellen, n_head, d_k, d_v):
    B, L, D = src_seq.shape
    pos = params["pos_table_enc"][:L, :D]
    enc = jnp.concatenate(
        [src_seq, jnp.broadcast_to(pos[None], (B, L, D))], axis=2)   # (B, L, 102)
    d_enc = enc.shape[2]
    # PyTorch hands `labellen` straight to the encoder as its mask; with
    # EncoderLayer unspecified we interpret it as a key-padding mask.
    mask = (jnp.arange(L)[None, :] < labellen[:, None]).astype(jnp.float32)
    x2d = enc.reshape(B * L, d_enc)
    for layer in params["enc_layers"]:
        a, f = layer["attn"], layer["ffn"]
        wqkv = jnp.concatenate([a["wq"], a["wk"], a["wv"]], axis=1)
        bqkv = jnp.concatenate([a["bq"], a["bk"], a["bv"]]).reshape(1, -1)
        x2d = pl.pallas_call(
            functools.partial(_encoder_layer_kernel, n_head=n_head,
                              d_k=d_k, d_v=d_v, batch=B),
            out_shape=jax.ShapeDtypeStruct((B * L, d_enc), jnp.float32),
        )(x2d, mask, wqkv, bqkv,
          a["wo"], a["bo"].reshape(1, -1),
          a["ln_w"].reshape(1, -1), a["ln_b"].reshape(1, -1),
          f["w1"], f["b1"].reshape(1, -1),
          f["w2"], f["b2"].reshape(1, -1),
          f["ln_w"].reshape(1, -1), f["ln_b"].reshape(1, -1))
    enc = x2d.reshape(B, L, d_enc)
    enc = enc + jnp.concatenate([src_seq, jnp.zeros_like(src_seq)], axis=2)
    return enc                                                        # (B, L, 102)


def decoder_forward(params, trg_seq, enc_output, labellen, n_head, d_k, d_v):
    B, T1, Df = trg_seq.shape
    T = T1 - 1                              # videomaxlen
    D2 = 2 * Df
    Ls = enc_output.shape[1]
    H = n_head
    layers = params["dec_layers"]
    Ld = len(layers)

    def stkw(get):                          # stack matrices along rows
        return jnp.concatenate([get(l) for l in layers], axis=0)

    def stkb(get):                          # stack 1-D vectors -> (Ld, N)
        return jnp.stack([get(l).reshape(-1) for l in layers], axis=0)

    cwq = stkw(lambda l: l["cross"]["wq"])
    cbq = stkb(lambda l: l["cross"]["bq"])
    cwk = stkw(lambda l: l["cross"]["wk"])
    cbk = stkb(lambda l: l["cross"]["bk"])
    cwv = stkw(lambda l: l["cross"]["wv"])
    cbv = stkb(lambda l: l["cross"]["bv"])
    cwo = stkw(lambda l: l["cross"]["wo"])
    cbo = stkb(lambda l: l["cross"]["bo"])
    clnw = stkb(lambda l: l["cross"]["ln_w"])
    clnb = stkb(lambda l: l["cross"]["ln_b"])
    fw1 = stkw(lambda l: l["ffn"]["w1"])
    fb1 = stkb(lambda l: l["ffn"]["b1"])
    fw2 = stkw(lambda l: l["ffn"]["w2"])
    fb2 = stkb(lambda l: l["ffn"]["b2"])
    flnw = stkb(lambda l: l["ffn"]["ln_w"])
    flnb = stkb(lambda l: l["ffn"]["ln_b"])

    prj_pad = jnp.pad(params["trg_word_prj"], ((0, 0), (0, D2 - Df)))   # (38, 38)
    pos_cat = jnp.zeros((T, D2), jnp.float32).at[:, Df:].set(
        params["pos_table_dec"][:T, :Df])                               # zeros | PE
    mask = (jnp.arange(Ls)[None, :] < labellen[:, None]).astype(jnp.float32)
    trg38 = jnp.zeros((B, T1, D2), jnp.float32).at[:, :, :Df].set(trg_seq)
    trg38 = trg38.reshape(B * T1, D2)
    enc2d = enc_output.reshape(B * Ls, enc_output.shape[2])

    kernel = functools.partial(
        _decoder_kernel, n_head=H, d_k=d_k, d_v=d_v, n_layers=Ld,
        batch=B, rows_per_b=T1, d_frame=Df)

    def cspec(shape):
        zeros = (0,) * len(shape)
        return pl.BlockSpec(shape, lambda i, _z=zeros: _z)

    args = [trg38, enc2d, pos_cat, mask,
            cwq, cbq, cwk, cbk, cwv, cbv, cwo, cbo, clnw, clnb,
            fw1, fb1, fw2, fb2, flnw, flnb, prj_pad]
    in_specs = [cspec(a.shape) for a in args]

    trg_out, attn_raw = pl.pallas_call(
        kernel,
        out_shape=(jax.ShapeDtypeStruct((B * T1, D2), jnp.float32),
                   jax.ShapeDtypeStruct((T, B * H, Ls), jnp.float32)),
        grid=(T,),
        in_specs=in_specs,
        out_specs=(cspec((B * T1, D2)),
                   pl.BlockSpec((None, B * H, Ls), lambda i: (i, 0, 0))),
        scratch_shapes=[pltpu.VMEM((Ld * B * Ls, H * d_k), jnp.float32),
                        pltpu.VMEM((Ld * B * Ls, H * d_v), jnp.float32)],
        compiler_params=pltpu.CompilerParams(
            dimension_semantics=("arbitrary",)),
    )(*args)

    trg_out = trg_out.reshape(B, T1, D2)[:, :, :Df]
    attn = attn_raw.reshape(T, B, H, Ls).transpose(1, 2, 0, 3)   # (B, H, T, Ls)
    return trg_out, attn


def transformer_forward(params, src_seq, trg_seq, labellen,
                        n_head, d_k, d_v, training=False):
    # Kept for fidelity with the reference forward; the fused kernels re-derive
    # the key-padding mask from labellen (the single-token decoder steps make
    # the subsequent mask a no-op).
    _ = get_pad_mask(src_seq, labellen)
    _ = get_subsequent_mask(trg_seq)
    enc_output = encoder_forward(params, src_seq, labellen, n_head, d_k, d_v)
    dec_output, attn_array = decoder_forward(
        params, trg_seq, enc_output, labellen, n_head, d_k, d_v)
    fake_video = dec_output[:, 1:, :]                  # (B, videomaxlen, 19)
    videomaxlen = trg_seq.shape[1] - 1
    ifend = fake_video[:, :, -1]
    hit = ifend > END_THRE
    found = jnp.any(hit, axis=1)
    first = jnp.argmax(hit.astype(jnp.int32), axis=1)
    if training:
        fallback = jnp.argmax(ifend, axis=1) + 1
    else:
        fallback = jnp.full_like(first, videomaxlen - 1)
    endframe = jnp.where(found, first + 1, fallback)
    # TODO(synk): SDTWVL (soft-DTW video loss) is an external, unprovided module;
    #             val/pos/del_ratio are not computed here.
    return fake_video, attn_array, endframe


# ----------------------------------------------------------------------------
if __name__ == "__main__":
    key = jax.random.PRNGKey(0)
    B = 2
    L_SRC = 8
    VIDEOMAXLEN = 6
    N_HEAD, D_K, D_V, D_INNER = 2, 16, 16, 64
    N_POSITION = max(VIDEOMAXLEN + 5, L_SRC + 5)

    k1, k2, kp = jax.random.split(key, 3)
    src_seq = jax.random.normal(k1, (B, L_SRC, D_MODEL_S), jnp.float32)
    trg_seq = 0.1 * jax.random.normal(k2, (B, VIDEOMAXLEN + 1, D_MODEL_F),
                                      jnp.float32)
    labellen = jnp.array([L_SRC, 5], dtype=jnp.int32)

    params = init_params(
        kp, n_head=N_HEAD, d_k=D_K, d_v=D_V, d_inner=D_INNER,
        n_layers_enc=1, n_layers_dec=1, n_position=N_POSITION)

    fake_video, attn_array, endframe = transformer_forward(
        params, src_seq, trg_seq, labellen, N_HEAD, D_K, D_V, training=False)

    jax.block_until_ready((fake_video, attn_array, endframe))
    assert fake_video.shape == (B, VIDEOMAXLEN, D_MODEL_F)
    assert attn_array.shape == (B, N_HEAD, VIDEOMAXLEN, L_SRC)
    assert endframe.shape == (B,)
    assert bool(jnp.all(jnp.isfinite(fake_video)))
    print("KERNEL_OK")
</pallas_src>

<mosaic_0001>
module attributes {stable_mosaic.version = 11 : i64} {
  func.func @_encoder_layer_kernel(%arg0: memref<16x102xf32, #tpu.memory_space<vmem>>, %arg1: memref<2x8xf32, #tpu.memory_space<vmem>>, %arg2: memref<102x96xf32, #tpu.memory_space<vmem>>, %arg3: memref<1x96xf32, #tpu.memory_space<vmem>>, %arg4: memref<32x102xf32, #tpu.memory_space<vmem>>, %arg5: memref<1x102xf32, #tpu.memory_space<vmem>>, %arg6: memref<1x102xf32, #tpu.memory_space<vmem>>, %arg7: memref<1x102xf32, #tpu.memory_space<vmem>>, %arg8: memref<102x64xf32, #tpu.memory_space<vmem>>, %arg9: memref<1x64xf32, #tpu.memory_space<vmem>>, %arg10: memref<64x102xf32, #tpu.memory_space<vmem>>, %arg11: memref<1x102xf32, #tpu.memory_space<vmem>>, %arg12: memref<1x102xf32, #tpu.memory_space<vmem>>, %arg13: memref<1x102xf32, #tpu.memory_space<vmem>>, %arg14: memref<16x102xf32, #tpu.memory_space<vmem>>) attributes {dimension_semantics = [], scalar_prefetch = 0 : i64, scratch_operands = 0 : i64, tpu.core_type = #tpu.core_type<tc>} {
    %c0 = arith.constant 0 : index
    %c0_0 = arith.constant 0 : index
    %0 = vector.load %arg1[%c0, %c0_0] : memref<2x8xf32, #tpu.memory_space<vmem>>, vector<2x8xf32>
    %c0_1 = arith.constant 0 : index
    %c0_2 = arith.constant 0 : index
    %1 = vector.load %arg2[%c0_1, %c0_2] : memref<102x96xf32, #tpu.memory_space<vmem>>, vector<102x96xf32>
    %c0_3 = arith.constant 0 : index
    %c0_4 = arith.constant 0 : index
    %2 = vector.load %arg3[%c0_3, %c0_4] : memref<1x96xf32, #tpu.memory_space<vmem>>, vector<1x96xf32>
    %c0_5 = arith.constant 0 : index
    %c0_6 = arith.constant 0 : index
    %3 = vector.load %arg4[%c0_5, %c0_6] : memref<32x102xf32, #tpu.memory_space<vmem>>, vector<32x102xf32>
    %c0_7 = arith.constant 0 : index
    %c0_8 = arith.constant 0 : index
    %4 = vector.load %arg5[%c0_7, %c0_8] : memref<1x102xf32, #tpu.memory_space<vmem>>, vector<1x102xf32>
    %c0_9 = arith.constant 0 : index
    %c0_10 = arith.constant 0 : index
    %5 = vector.load %arg8[%c0_9, %c0_10] : memref<102x64xf32, #tpu.memory_space<vmem>>, vector<102x64xf32>
    %c0_11 = arith.constant 0 : index
    %c0_12 = arith.constant 0 : index
    %6 = vector.load %arg9[%c0_11, %c0_12] : memref<1x64xf32, #tpu.memory_space<vmem>>, vector<1x64xf32>
    %c0_13 = arith.constant 0 : index
    %c0_14 = arith.constant 0 : index
    %7 = vector.load %arg10[%c0_13, %c0_14] : memref<64x102xf32, #tpu.memory_space<vmem>>, vector<64x102xf32>
    %c0_15 = arith.constant 0 : index
    %c0_16 = arith.constant 0 : index
    %8 = vector.load %arg11[%c0_15, %c0_16] : memref<1x102xf32, #tpu.memory_space<vmem>>, vector<1x102xf32>
    %c0_17 = arith.constant 0 : index
    %c0_18 = arith.constant 0 : index
    %9 = vector.load %arg6[%c0_17, %c0_18] : memref<1x102xf32, #tpu.memory_space<vmem>>, vector<1x102xf32>
    %c0_19 = arith.constant 0 : index
    %c0_20 = arith.constant 0 : index
    %10 = vector.load %arg7[%c0_19, %c0_20] : memref<1x102xf32, #tpu.memory_space<vmem>>, vector<1x102xf32>
    %c0_21 = arith.constant 0 : index
    %c0_22 = arith.constant 0 : index
    %11 = vector.load %arg12[%c0_21, %c0_22] : memref<1x102xf32, #tpu.memory_space<vmem>>, vector<1x102xf32>
    %c0_23 = arith.constant 0 : index
    %c0_24 = arith.constant 0 : index
    %12 = vector.load %arg13[%c0_23, %c0_24] : memref<1x102xf32, #tpu.memory_space<vmem>>, vector<1x102xf32>
    %c0_25 = arith.constant 0 : index
    %c0_26 = arith.constant 0 : index
    %13 = vector.load %arg0[%c0_25, %c0_26] : memref<16x102xf32, #tpu.memory_space<vmem>>, vector<8x102xf32>
    %14 = vector.extract_strided_slice %0 {offsets = [0, 0], sizes = [1, 8], strides = [1, 1]} : vector<2x8xf32> to vector<1x8xf32>
    %cst = arith.constant dense<0.000000e+00> : vector<8x96xf32>
    %15 = tpu.matmul %13, %1, %cst {dimension_numbers = #tpu.dot_dimension_numbers<[1], [0], [0], [1], [0, 0, 1, 1], [], []>} : vector<8x102xf32>, vector<102x96xf32>, vector<8x96xf32> -> vector<8x96xf32>
    %16 = vector.broadcast %2 : vector<1x96xf32> to vector<8x96xf32>
    %17 = arith.addf %15, %16 : vector<8x96xf32>
    %18 = vector.extract_strided_slice %17 {offsets = [0, 0], sizes = [8, 32], strides = [1, 1]} : vector<8x96xf32> to vector<8x32xf32>
    %19 = vector.extract_strided_slice %17 {offsets = [0, 32], sizes = [8, 32], strides = [1, 1]} : vector<8x96xf32> to vector<8x32xf32>
    %20 = vector.extract_strided_slice %17 {offsets = [0, 64], sizes = [8, 32], strides = [1, 1]} : vector<8x96xf32> to vector<8x32xf32>
    %cst_27 = arith.constant 0.000000e+00 : f32
    %21 = vector.broadcast %cst_27 : f32 to vector<8x102xf32>
    %22 = vector.extract_strided_slice %18 {offsets = [0, 0], sizes = [8, 16], strides = [1, 1]} : vector<8x32xf32> to vector<8x16xf32>
    %23 = vector.extract_strided_slice %19 {offsets = [0, 0], sizes = [8, 16], strides = [1, 1]} : vector<8x32xf32> to vector<8x16xf32>
    %24 = vector.extract_strided_slice %20 {offsets = [0, 0], sizes = [8, 16], strides = [1, 1]} : vector<8x32xf32> to vector<8x16xf32>
    %cst_28 = arith.constant dense<0.000000e+00> : vector<8x8xf32>
    %25 = tpu.matmul %22, %23, %cst_28 {dimension_numbers = #tpu.dot_dimension_numbers<[1], [1], [0], [0], [0, 0, 1, 0], [], []>} : vector<8x16xf32>, vector<8x16xf32>, vector<8x8xf32> -> vector<8x8xf32>
    %cst_29 = arith.constant 2.500000e-01 : f32
    %26 = vector.broadcast %cst_29 : f32 to vector<8x8xf32>
    %27 = arith.mulf %25, %26 : vector<8x8xf32>
    %cst_30 = arith.constant 5.000000e-01 : f32
    %28 = vector.broadcast %cst_30 : f32 to vector<1x8xf32>
    %29 = arith.cmpf ogt, %14, %28 : vector<1x8xf32>
    %cst_31 = arith.constant -1.000000e+09 : f32
    %30 = vector.shape_cast %29 : vector<1x8xi1> to vector<1x8xi1>
    %31 = vector.broadcast %30 : vector<1x8xi1> to vector<8x8xi1>
    %32 = vector.broadcast %cst_31 : f32 to vector<8x8xf32>
    %33 = arith.select %31, %27, %32 : vector<8x8xi1>, vector<8x8xf32>
    %cst_32 = arith.constant dense<0xFF800000> : vector<8xf32>
    %34 = vector.multi_reduction <maximumf>, %33, %cst_32 [1] : vector<8x8xf32> to vector<8xf32>
    %35 = vector.shape_cast %34 : vector<8xf32> to vector<8x1xf32>
    %36 = vector.broadcast %35 : vector<8x1xf32> to vector<8x8xf32>
    %37 = arith.subf %33, %36 : vector<8x8xf32>
    %38 = math.exp %37 : vector<8x8xf32>
    %cst_33 = arith.constant dense<0.000000e+00> : vector<8xf32>
    %39 = vector.multi_reduction <add>, %38, %cst_33 [1] : vector<8x8xf32> to vector<8xf32>
    %40 = vector.shape_cast %39 : vector<8xf32> to vector<8x1xf32>
    %41 = tpu.reciprocal %40 {approx = true} : vector<8x1xf32> -> vector<8x1xf32>
    %42 = vector.broadcast %41 : vector<8x1xf32> to vector<8x8xf32>
    %43 = arith.mulf %38, %42 : vector<8x8xf32>
    %cst_34 = arith.constant dense<0.000000e+00> : vector<8x16xf32>
    %44 = tpu.matmul %43, %24, %cst_34 {dimension_numbers = #tpu.dot_dimension_numbers<[1], [0], [0], [1], [0, 0, 1, 1], [], []>} : vector<8x8xf32>, vector<8x16xf32>, vector<8x16xf32> -> vector<8x16xf32>
    %45 = vector.extract_strided_slice %3 {offsets = [0, 0], sizes = [16, 102], strides = [1, 1]} : vector<32x102xf32> to vector<16x102xf32>
    %cst_35 = arith.constant dense<0.000000e+00> : vector<8x102xf32>
    %46 = tpu.matmul %44, %45, %cst_35 {dimension_numbers = #tpu.dot_dimension_numbers<[1], [0], [0], [1], [0, 0, 1, 1], [], []>} : vector<8x16xf32>, vector<16x102xf32>, vector<8x102xf32> -> vector<8x102xf32>
    %47 = arith.addf %21, %46 : vector<8x102xf32>
    %48 = vector.extract_strided_slice %18 {offsets = [0, 16], sizes = [8, 16], strides = [1, 1]} : vector<8x32xf32> to vector<8x16xf32>
    %49 = vector.extract_strided_slice %19 {offsets = [0, 16], sizes = [8, 16], strides = [1, 1]} : vector<8x32xf32> to vector<8x16xf32>
    %50 = vector.extract_strided_slice %20 {offsets = [0, 16], sizes = [8, 16], strides = [1, 1]} : vector<8x32xf32> to vector<8x16xf32>
    %cst_36 = arith.constant dense<0.000000e+00> : vector<8x8xf32>
    %51 = tpu.matmul %48, %49, %cst_36 {dimension_numbers = #tpu.dot_dimension_numbers<[1], [1], [0], [0], [0, 0, 1, 0], [], []>} : vector<8x16xf32>, vector<8x16xf32>, vector<8x8xf32> -> vector<8x8xf32>
    %cst_37 = arith.constant 2.500000e-01 : f32
    %52 = vector.broadcast %cst_37 : f32 to vector<8x8xf32>
    %53 = arith.mulf %51, %52 : vector<8x8xf32>
    %cst_38 = arith.constant 5.000000e-01 : f32
    %54 = vector.broadcast %cst_38 : f32 to vector<1x8xf32>
    %55 = arith.cmpf ogt, %14, %54 : vector<1x8xf32>
    %cst_39 = arith.constant -1.000000e+09 : f32
    %56 = vector.shape_cast %55 : vector<1x8xi1> to vector<1x8xi1>
    %57 = vector.broadcast %56 : vector<1x8xi1> to vector<8x8xi1>
    %58 = vector.broadcast %cst_39 : f32 to vector<8x8xf32>
    %59 = arith.select %57, %53, %58 : vector<8x8xi1>, vector<8x8xf32>
    %cst_40 = arith.constant dense<0xFF800000> : vector<8xf32>
    %60 = vector.multi_reduction <maximumf>, %59, %cst_40 [1] : vector<8x8xf32> to vector<8xf32>
    %61 = vector.shape_cast %60 : vector<8xf32> to vector<8x1xf32>
    %62 = vector.broadcast %61 : vector<8x1xf32> to vector<8x8xf32>
    %63 = arith.subf %59, %62 : vector<8x8xf32>
    %64 = math.exp %63 : vector<8x8xf32>
    %cst_41 = arith.constant dense<0.000000e+00> : vector<8xf32>
    %65 = vector.multi_reduction <add>, %64, %cst_41 [1] : vector<8x8xf32> to vector<8xf32>
    %66 = vector.shape_cast %65 : vector<8xf32> to vector<8x1xf32>
    %67 = tpu.reciprocal %66 {approx = true} : vector<8x1xf32> -> vector<8x1xf32>
    %68 = vector.broadcast %67 : vector<8x1xf32> to vector<8x8xf32>
    %69 = arith.mulf %64, %68 : vector<8x8xf32>
    %cst_42 = arith.constant dense<0.000000e+00> : vector<8x16xf32>
    %70 = tpu.matmul %69, %50, %cst_42 {dimension_numbers = #tpu.dot_dimension_numbers<[1], [0], [0], [1], [0, 0, 1, 1], [], []>} : vector<8x8xf32>, vector<8x16xf32>, vector<8x16xf32> -> vector<8x16xf32>
    %71 = vector.extract_strided_slice %3 {offsets = [16, 0], sizes = [16, 102], strides = [1, 1]} : vector<32x102xf32> to vector<16x102xf32>
    %cst_43 = arith.constant dense<0.000000e+00> : vector<8x102xf32>
    %72 = tpu.matmul %70, %71, %cst_43 {dimension_numbers = #tpu.dot_dimension_numbers<[1], [0], [0], [1], [0, 0, 1, 1], [], []>} : vector<8x16xf32>, vector<16x102xf32>, vector<8x102xf32> -> vector<8x102xf32>
    %73 = arith.addf %47, %72 : vector<8x102xf32>
    %74 = vector.broadcast %4 : vector<1x102xf32> to vector<8x102xf32>
    %75 = arith.addf %73, %74 : vector<8x102xf32>
    %76 = arith.addf %75, %13 : vector<8x102xf32>
    %cst_44 = arith.constant dense<0.000000e+00> : vector<8xf32>
    %77 = vector.multi_reduction <add>, %76, %cst_44 [1] : vector<8x102xf32> to vector<8xf32>
    %78 = vector.shape_cast %77 : vector<8xf32> to vector<8x1xf32>
    %cst_45 = arith.constant 1.020000e+02 : f32
    %79 = vector.broadcast %cst_45 : f32 to vector<8x1xf32>
    %80 = arith.divf %78, %79 : vector<8x1xf32>
    %81 = vector.broadcast %80 : vector<8x1xf32> to vector<8x102xf32>
    %82 = arith.subf %76, %81 : vector<8x102xf32>
    %83 = arith.mulf %82, %82 : vector<8x102xf32>
    %cst_46 = arith.constant dense<0.000000e+00> : vector<8xf32>
    %84 = vector.multi_reduction <add>, %83, %cst_46 [1] : vector<8x102xf32> to vector<8xf32>
    %85 = vector.shape_cast %84 : vector<8xf32> to vector<8x1xf32>
    %cst_47 = arith.constant 1.020000e+02 : f32
    %86 = vector.broadcast %cst_47 : f32 to vector<8x1xf32>
    %87 = arith.divf %85, %86 : vector<8x1xf32>
    %cst_48 = arith.constant 9.99999974E-6 : f32
    %88 = vector.broadcast %cst_48 : f32 to vector<8x1xf32>
    %89 = arith.addf %87, %88 : vector<8x1xf32>
    %90 = math.rsqrt %89 : vector<8x1xf32>
    %91 = vector.broadcast %90 : vector<8x1xf32> to vector<8x102xf32>
    %92 = arith.mulf %82, %91 : vector<8x102xf32>
    %93 = vector.broadcast %9 : vector<1x102xf32> to vector<8x102xf32>
    %94 = arith.mulf %92, %93 : vector<8x102xf32>
    %95 = vector.broadcast %10 : vector<1x102xf32> to vector<8x102xf32>
    %96 = arith.addf %94, %95 : vector<8x102xf32>
    %cst_49 = arith.constant dense<0.000000e+00> : vector<8x64xf32>
    %97 = tpu.matmul %96, %5, %cst_49 {dimension_numbers = #tpu.dot_dimension_numbers<[1], [0], [0], [1], [0, 0, 1, 1], [], []>} : vector<8x102xf32>, vector<102x64xf32>, vector<8x64xf32> -> vector<8x64xf32>
    %98 = vector.broadcast %6 : vector<1x64xf32> to vector<8x64xf32>
    %99 = arith.addf %97, %98 : vector<8x64xf32>
    %cst_50 = arith.constant 0.000000e+00 : f32
    %100 = vector.broadcast %cst_50 : f32 to vector<8x64xf32>
    %101 = arith.maximumf %99, %100 : vector<8x64xf32>
    %cst_51 = arith.constant dense<0.000000e+00> : vector<8x102xf32>
    %102 = tpu.matmul %101, %7, %cst_51 {dimension_numbers = #tpu.dot_dimension_numbers<[1], [0], [0], [1], [0, 0, 1, 1], [], []>} : vector<8x64xf32>, vector<64x102xf32>, vector<8x102xf32> -> vector<8x102xf32>
    %103 = vector.broadcast %8 : vector<1x102xf32> to vector<8x102xf32>
    %104 = arith.addf %102, %103 : vector<8x102xf32>
    %105 = arith.addf %104, %96 : vector<8x102xf32>
    %cst_52 = arith.constant dense<0.000000e+00> : vector<8xf32>
    %106 = vector.multi_reduction <add>, %105, %cst_52 [1] : vector<8x102xf32> to vector<8xf32>
    %107 = vector.shape_cast %106 : vector<8xf32> to vector<8x1xf32>
    %cst_53 = arith.constant 1.020000e+02 : f32
    %108 = vector.broadcast %cst_53 : f32 to vector<8x1xf32>
    %109 = arith.divf %107, %108 : vector<8x1xf32>
    %110 = vector.broadcast %109 : vector<8x1xf32> to vector<8x102xf32>
    %111 = arith.subf %105, %110 : vector<8x102xf32>
    %112 = arith.mulf %111, %111 : vector<8x102xf32>
    %cst_54 = arith.constant dense<0.000000e+00> : vector<8xf32>
    %113 = vector.multi_reduction <add>, %112, %cst_54 [1] : vector<8x102xf32> to vector<8xf32>
    %114 = vector.shape_cast %113 : vector<8xf32> to vector<8x1xf32>
    %cst_55 = arith.constant 1.020000e+02 : f32
    %115 = vector.broadcast %cst_55 : f32 to vector<8x1xf32>
    %116 = arith.divf %114, %115 : vector<8x1xf32>
    %cst_56 = arith.constant 9.99999974E-6 : f32
    %117 = vector.broadcast %cst_56 : f32 to vector<8x1xf32>
    %118 = arith.addf %116, %117 : vector<8x1xf32>
    %119 = math.rsqrt %118 : vector<8x1xf32>
    %120 = vector.broadcast %119 : vector<8x1xf32> to vector<8x102xf32>
    %121 = arith.mulf %111, %120 : vector<8x102xf32>
    %122 = vector.broadcast %11 : vector<1x102xf32> to vector<8x102xf32>
    %123 = arith.mulf %121, %122 : vector<8x102xf32>
    %124 = vector.broadcast %12 : vector<1x102xf32> to vector<8x102xf32>
    %125 = arith.addf %123, %124 : vector<8x102xf32>
    %c0_57 = arith.constant 0 : index
    %c0_58 = arith.constant 0 : index
    %126 = vector.load %arg14[%c0_57, %c0_58] : memref<16x102xf32, #tpu.memory_space<vmem>>, vector<8x102xf32>
    tpu.vector_store %arg14[%c0_57, %c0_58], %125 {strides = array<i32>} : memref<16x102xf32, #tpu.memory_space<vmem>>, vector<8x102xf32>,
    %c8 = arith.constant 8 : index
    %c0_59 = arith.constant 0 : index
    %127 = vector.load %arg0[%c8, %c0_59] : memref<16x102xf32, #tpu.memory_space<vmem>>, vector<8x102xf32>
    %128 = vector.extract_strided_slice %0 {offsets = [1, 0], sizes = [1, 8], strides = [1, 1]} : vector<2x8xf32> to vector<1x8xf32>
    %cst_60 = arith.constant dense<0.000000e+00> : vector<8x96xf32>
    %129 = tpu.matmul %127, %1, %cst_60 {dimension_numbers = #tpu.dot_dimension_numbers<[1], [0], [0], [1], [0, 0, 1, 1], [], []>} : vector<8x102xf32>, vector<102x96xf32>, vector<8x96xf32> -> vector<8x96xf32>
    %130 = vector.broadcast %2 : vector<1x96xf32> to vector<8x96xf32>
    %131 = arith.addf %129, %130 : vector<8x96xf32>
    %132 = vector.extract_strided_slice %131 {offsets = [0, 0], sizes = [8, 32], strides = [1, 1]} : vector<8x96xf32> to vector<8x32xf32>
    %133 = vector.extract_strided_slice %131 {offsets = [0, 32], sizes = [8, 32], strides = [1, 1]} : vector<8x96xf32> to vector<8x32xf32>
    %134 = vector.extract_strided_slice %131 {offsets = [0, 64], sizes = [8, 32], strides = [1, 1]} : vector<8x96xf32> to vector<8x32xf32>
    %cst_61 = arith.constant 0.000000e+00 : f32
    %135 = vector.broadcast %cst_61 : f32 to vector<8x102xf32>
    %136 = vector.extract_strided_slice %132 {offsets = [0, 0], sizes = [8, 16], strides = [1, 1]} : vector<8x32xf32> to vector<8x16xf32>
    %137 = vector.extract_strided_slice %133 {offsets = [0, 0], sizes = [8, 16], strides = [1, 1]} : vector<8x32xf32> to vector<8x16xf32>
    %138 = vector.extract_strided_slice %134 {offsets = [0, 0], sizes = [8, 16], strides = [1, 1]} : vector<8x32xf32> to vector<8x16xf32>
    %cst_62 = arith.constant dense<0.000000e+00> : vector<8x8xf32>
    %139 = tpu.matmul %136, %137, %cst_62 {dimension_numbers = #tpu.dot_dimension_numbers<[1], [1], [0], [0], [0, 0, 1, 0], [], []>} : vector<8x16xf32>, vector<8x16xf32>, vector<8x8xf32> -> vector<8x8xf32>
    %cst_63 = arith.constant 2.500000e-01 : f32
    %140 = vector.broadcast %cst_63 : f32 to vector<8x8xf32>
    %141 = arith.mulf %139, %140 : vector<8x8xf32>
    %cst_64 = arith.constant 5.000000e-01 : f32
    %142 = vector.broadcast %cst_64 : f32 to vector<1x8xf32>
    %143 = arith.cmpf ogt, %128, %142 : vector<1x8xf32>
    %cst_65 = arith.constant -1.000000e+09 : f32
    %144 = vector.shape_cast %143 : vector<1x8xi1> to vector<1x8xi1>
    %145 = vector.broadcast %144 : vector<1x8xi1> to vector<8x8xi1>
    %146 = vector.broadcast %cst_65 : f32 to vector<8x8xf32>
    %147 = arith.select %145, %141, %146 : vector<8x8xi1>, vector<8x8xf32>
    %cst_66 = arith.constant dense<0xFF800000> : vector<8xf32>
    %148 = vector.multi_reduction <maximumf>, %147, %cst_66 [1] : vector<8x8xf32> to vector<8xf32>
    %149 = vector.shape_cast %148 : vector<8xf32> to vector<8x1xf32>
    %150 = vector.broadcast %149 : vector<8x1xf32> to vector<8x8xf32>
    %151 = arith.subf %147, %150 : vector<8x8xf32>
    %152 = math.exp %151 : vector<8x8xf32>
    %cst_67 = arith.constant dense<0.000000e+00> : vector<8xf32>
    %153 = vector.multi_reduction <add>, %152, %cst_67 [1] : vector<8x8xf32> to vector<8xf32>
    %154 = vector.shape_cast %153 : vector<8xf32> to vector<8x1xf32>
    %155 = tpu.reciprocal %154 {approx = true} : vector<8x1xf32> -> vector<8x1xf32>
    %156 = vector.broadcast %155 : vector<8x1xf32> to vector<8x8xf32>
    %157 = arith.mulf %152, %156 : vector<8x8xf32>
    %cst_68 = arith.constant dense<0.000000e+00> : vector<8x16xf32>
    %158 = tpu.matmul %157, %138, %cst_68 {dimension_numbers = #tpu.dot_dimension_numbers<[1], [0], [0], [1], [0, 0, 1, 1], [], []>} : vector<8x8xf32>, vector<8x16xf32>, vector<8x16xf32> -> vector<8x16xf32>
    %159 = vector.extract_strided_slice %3 {offsets = [0, 0], sizes = [16, 102], strides = [1, 1]} : vector<32x102xf32> to vector<16x102xf32>
    %cst_69 = arith.constant dense<0.000000e+00> : vector<8x102xf32>
    %160 = tpu.matmul %158, %159, %cst_69 {dimension_numbers = #tpu.dot_dimension_numbers<[1], [0], [0], [1], [0, 0, 1, 1], [], []>} : vector<8x16xf32>, vector<16x102xf32>, vector<8x102xf32> -> vector<8x102xf32>
    %161 = arith.addf %135, %160 : vector<8x102xf32>
    %162 = vector.extract_strided_slice %132 {offsets = [0, 16], sizes = [8, 16], strides = [1, 1]} : vector<8x32xf32> to vector<8x16xf32>
    %163 = vector.extract_strided_slice %133 {offsets = [0, 16], sizes = [8, 16], strides = [1, 1]} : vector<8x32xf32> to vector<8x16xf32>
    %164 = vector.extract_strided_slice %134 {offsets = [0, 16], sizes = [8, 16], strides = [1, 1]} : vector<8x32xf32> to vector<8x16xf32>
    %cst_70 = arith.constant dense<0.000000e+00> : vector<8x8xf32>
    %165 = tpu.matmul %162, %163, %cst_70 {dimension_numbers = #tpu.dot_dimension_numbers<[1], [1], [0], [0], [0, 0, 1, 0], [], []>} : vector<8x16xf32>, vector<8x16xf32>, vector<8x8xf32> -> vector<8x8xf32>
    %cst_71 = arith.constant 2.500000e-01 : f32
    %166 = vector.broadcast %cst_71 : f32 to vector<8x8xf32>
    %167 = arith.mulf %165, %166 : vector<8x8xf32>
    %cst_72 = arith.constant 5.000000e-01 : f32
    %168 = vector.broadcast %cst_72 : f32 to vector<1x8xf32>
    %169 = arith.cmpf ogt, %128, %168 : vector<1x8xf32>
    %cst_73 = arith.constant -1.000000e+09 : f32
    %170 = vector.shape_cast %169 : vector<1x8xi1> to vector<1x8xi1>
    %171 = vector.broadcast %170 : vector<1x8xi1> to vector<8x8xi1>
    %172 = vector.broadcast %cst_73 : f32 to vector<8x8xf32>
    %173 = arith.select %171, %167, %172 : vector<8x8xi1>, vector<8x8xf32>
    %cst_74 = arith.constant dense<0xFF800000> : vector<8xf32>
    %174 = vector.multi_reduction <maximumf>, %173, %cst_74 [1] : vector<8x8xf32> to vector<8xf32>
    %175 = vector.shape_cast %174 : vector<8xf32> to vector<8x1xf32>
    %176 = vector.broadcast %175 : vector<8x1xf32> to vector<8x8xf32>
    %177 = arith.subf %173, %176 : vector<8x8xf32>
    %178 = math.exp %177 : vector<8x8xf32>
    %cst_75 = arith.constant dense<0.000000e+00> : vector<8xf32>
    %179 = vector.multi_reduction <add>, %178, %cst_75 [1] : vector<8x8xf32> to vector<8xf32>
    %180 = vector.shape_cast %179 : vector<8xf32> to vector<8x1xf32>
    %181 = tpu.reciprocal %180 {approx = true} : vector<8x1xf32> -> vector<8x1xf32>
    %182 = vector.broadcast %181 : vector<8x1xf32> to vector<8x8xf32>
    %183 = arith.mulf %178, %182 : vector<8x8xf32>
    %cst_76 = arith.constant dense<0.000000e+00> : vector<8x16xf32>
    %184 = tpu.matmul %183, %164, %cst_76 {dimension_numbers = #tpu.dot_dimension_numbers<[1], [0], [0], [1], [0, 0, 1, 1], [], []>} : vector<8x8xf32>, vector<8x16xf32>, vector<8x16xf32> -> vector<8x16xf32>
    %185 = vector.extract_strided_slice %3 {offsets = [16, 0], sizes = [16, 102], strides = [1, 1]} : vector<32x102xf32> to vector<16x102xf32>
    %cst_77 = arith.constant dense<0.000000e+00> : vector<8x102xf32>
    %186 = tpu.matmul %184, %185, %cst_77 {dimension_numbers = #tpu.dot_dimension_numbers<[1], [0], [0], [1], [0, 0, 1, 1], [], []>} : vector<8x16xf32>, vector<16x102xf32>, vector<8x102xf32> -> vector<8x102xf32>
    %187 = arith.addf %161, %186 : vector<8x102xf32>
    %188 = vector.broadcast %4 : vector<1x102xf32> to vector<8x102xf32>
    %189 = arith.addf %187, %188 : vector<8x102xf32>
    %190 = arith.addf %189, %127 : vector<8x102xf32>
    %cst_78 = arith.constant dense<0.000000e+00> : vector<8xf32>
    %191 = vector.multi_reduction <add>, %190, %cst_78 [1] : vector<8x102xf32> to vector<8xf32>
    %192 = vector.shape_cast %191 : vector<8xf32> to vector<8x1xf32>
    %cst_79 = arith.constant 1.020000e+02 : f32
    %193 = vector.broadcast %cst_79 : f32 to vector<8x1xf32>
    %194 = arith.divf %192, %193 : vector<8x1xf32>
    %195 = vector.broadcast %194 : vector<8x1xf32> to vector<8x102xf32>
    %196 = arith.subf %190, %195 : vector<8x102xf32>
    %197 = arith.mulf %196, %196 : vector<8x102xf32>
    %cst_80 = arith.constant dense<0.000000e+00> : vector<8xf32>
    %198 = vector.multi_reduction <add>, %197, %cst_80 [1] : vector<8x102xf32> to vector<8xf32>
    %199 = vector.shape_cast %198 : vector<8xf32> to vector<8x1xf32>
    %cst_81 = arith.constant 1.020000e+02 : f32
    %200 = vector.broadcast %cst_81 : f32 to vector<8x1xf32>
    %201 = arith.divf %199, %200 : vector<8x1xf32>
    %cst_82 = arith.constant 9.99999974E-6 : f32
    %202 = vector.broadcast %cst_82 : f32 to vector<8x1xf32>
    %203 = arith.addf %201, %202 : vector<8x1xf32>
    %204 = math.rsqrt %203 : vector<8x1xf32>
    %205 = vector.broadcast %204 : vector<8x1xf32> to vector<8x102xf32>
    %206 = arith.mulf %196, %205 : vector<8x102xf32>
    %207 = vector.broadcast %9 : vector<1x102xf32> to vector<8x102xf32>
    %208 = arith.mulf %206, %207 : vector<8x102xf32>
    %209 = vector.broadcast %10 : vector<1x102xf32> to vector<8x102xf32>
    %210 = arith.addf %208, %209 : vector<8x102xf32>
    %cst_83 = arith.constant dense<0.000000e+00> : vector<8x64xf32>
    %211 = tpu.matmul %210, %5, %cst_83 {dimension_numbers = #tpu.dot_dimension_numbers<[1], [0], [0], [1], [0, 0, 1, 1], [], []>} : vector<8x102xf32>, vector<102x64xf32>, vector<8x64xf32> -> vector<8x64xf32>
    %212 = vector.broadcast %6 : vector<1x64xf32> to vector<8x64xf32>
    %213 = arith.addf %211, %212 : vector<8x64xf32>
    %cst_84 = arith.constant 0.000000e+00 : f32
    %214 = vector.broadcast %cst_84 : f32 to vector<8x64xf32>
    %215 = arith.maximumf %213, %214 : vector<8x64xf32>
    %cst_85 = arith.constant dense<0.000000e+00> : vector<8x102xf32>
    %216 = tpu.matmul %215, %7, %cst_85 {dimension_numbers = #tpu.dot_dimension_numbers<[1], [0], [0], [1], [0, 0, 1, 1], [], []>} : vector<8x64xf32>, vector<64x102xf32>, vector<8x102xf32> -> vector<8x102xf32>
    %217 = vector.broadcast %8 : vector<1x102xf32> to vector<8x102xf32>
    %218 = arith.addf %216, %217 : vector<8x102xf32>
    %219 = arith.addf %218, %210 : vector<8x102xf32>
    %cst_86 = arith.constant dense<0.000000e+00> : vector<8xf32>
    %220 = vector.multi_reduction <add>, %219, %cst_86 [1] : vector<8x102xf32> to vector<8xf32>
    %221 = vector.shape_cast %220 : vector<8xf32> to vector<8x1xf32>
    %cst_87 = arith.constant 1.020000e+02 : f32
    %222 = vector.broadcast %cst_87 : f32 to vector<8x1xf32>
    %223 = arith.divf %221, %222 : vector<8x1xf32>
    %224 = vector.broadcast %223 : vector<8x1xf32> to vector<8x102xf32>
    %225 = arith.subf %219, %224 : vector<8x102xf32>
    %226 = arith.mulf %225, %225 : vector<8x102xf32>
    %cst_88 = arith.constant dense<0.000000e+00> : vector<8xf32>
    %227 = vector.multi_reduction <add>, %226, %cst_88 [1] : vector<8x102xf32> to vector<8xf32>
    %228 = vector.shape_cast %227 : vector<8xf32> to vector<8x1xf32>
    %cst_89 = arith.constant 1.020000e+02 : f32
    %229 = vector.broadcast %cst_89 : f32 to vector<8x1xf32>
    %230 = arith.divf %228, %229 : vector<8x1xf32>
    %cst_90 = arith.constant 9.99999974E-6 : f32
    %231 = vector.broadcast %cst_90 : f32 to vector<8x1xf32>
    %232 = arith.addf %230, %231 : vector<8x1xf32>
    %233 = math.rsqrt %232 : vector<8x1xf32>
    %234 = vector.broadcast %233 : vector<8x1xf32> to vector<8x102xf32>
    %235 = arith.mulf %225, %234 : vector<8x102xf32>
    %236 = vector.broadcast %11 : vector<1x102xf32> to vector<8x102xf32>
    %237 = arith.mulf %235, %236 : vector<8x102xf32>
    %238 = vector.broadcast %12 : vector<1x102xf32> to vector<8x102xf32>
    %239 = arith.addf %237, %238 : vector<8x102xf32>
    %c8_91 = arith.constant 8 : index
    %c0_92 = arith.constant 0 : index
    %240 = vector.load %arg14[%c8_91, %c0_92] : memref<16x102xf32, #tpu.memory_space<vmem>>, vector<8x102xf32>
    tpu.vector_store %arg14[%c8_91, %c0_92], %239 {strides = array<i32>} : memref<16x102xf32, #tpu.memory_space<vmem>>, vector<8x102xf32>,
    return
  }
}

</mosaic_0001>

<llo_original>
// kernel: tpu_custom_call.1
$region0: #{tpu_custom_call.1}
  #allocation0 [shape = 'u32[]', space=smem, size = 0x4, offset = 0x4, fixed_abs, tag = 'smem constant byte address 0x4 - core index']
  #allocation1 [shape = 'u32[72,128]{1,0:T(1,128)}', space=vmem, size = 0x9000, scoped, tag = 'internal scratch']
  %s0 = inlined_call_operand.vmem [shape: f32[16,102], index: 0, kind: input, shape index: {}]
  %s1 = inlined_call_operand.vmem [shape: f32[2,8], index: 1, kind: input, shape index: {}]
  %s2 = inlined_call_operand.vmem [shape: f32[102,96], index: 2, kind: input, shape index: {}]
  %s3 = inlined_call_operand.vmem [shape: f32[1,96], index: 3, kind: input, shape index: {}]
  %s4 = inlined_call_operand.vmem [shape: f32[32,102], index: 4, kind: input, shape index: {}]
  %s5 = inlined_call_operand.vmem [shape: f32[1,102], index: 5, kind: input, shape index: {}]
  %s6 = inlined_call_operand.vmem [shape: f32[1,102], index: 6, kind: input, shape index: {}]
  %s7 = inlined_call_operand.vmem [shape: f32[1,102], index: 7, kind: input, shape index: {}]
  %s8 = inlined_call_operand.vmem [shape: f32[102,64], index: 8, kind: input, shape index: {}]
  %s9 = inlined_call_operand.vmem [shape: f32[1,64], index: 9, kind: input, shape index: {}]
  %s10 = inlined_call_operand.vmem [shape: f32[64,102], index: 10, kind: input, shape index: {}]
  %s11 = inlined_call_operand.vmem [shape: f32[1,102], index: 11, kind: input, shape index: {}]
  %s12 = inlined_call_operand.vmem [shape: f32[1,102], index: 12, kind: input, shape index: {}]
  %s13 = inlined_call_operand.vmem [shape: f32[1,102], index: 13, kind: input, shape index: {}]
  %s14 = inlined_call_operand.hbm [shape: f32[16,102], index: 14, kind: output, shape index: {}]
  %s15 = sld [smem:[#allocation0]]
  $region66: #{tpu_custom_call.1} parent=0
    _
  %s17 = ssub.s32 1, %s15
  %s18 = scalar_select 0, %s17, %s15
  $region1: #{tpu_custom_call.1} parent=0
    #allocation2 [shape = 'u8[8192]{0}', space=vmem, size = 0x2000, scoped, tag = 'output window, operand 0, single buffered']
    #allocation3 [shape = 's32[1]{0}', space=sflag, size = 0x4, scoped, tag = 'scoped memory for tpu_custom_call.1']
    %19 = vsyncpa [#allocation3], 0
    // Predicated region
    $region2: #{tpu_custom_call.1} parent=1 // pred_check
      _
    $region3: #{tpu_custom_call.1} parent=1 // pred_check_branch
      %21 = sbr.rel (0) target = $region5
    $region4: #{tpu_custom_call.1} parent=1 // pred_region
      _
    $region5: #{tpu_custom_call.1} parent=1 // pred_fallthru
      _
    // Predicated region
    $region6: #{tpu_custom_call.1} parent=1 // pred_check
      _
    $region7: #{tpu_custom_call.1} parent=1 // pred_check_branch
      %23 = sbr.rel (0) target = $region9
    $region8: #{tpu_custom_call.1} parent=1 // pred_region
      _
    $region9: #{tpu_custom_call.1} parent=1 // pred_fallthru
      _
    // Predicated region
    $region10: #{tpu_custom_call.1} parent=1 // pred_check
      _
    $region11: #{tpu_custom_call.1} parent=1 // pred_check_branch
      %25 = sbr.rel (0) target = $region13
    $region12: #{tpu_custom_call.1} parent=1 // pred_region
      _
    $region13: #{tpu_custom_call.1} parent=1 // pred_fallthru
      _
    // Predicated region
    $region14: #{tpu_custom_call.1} parent=1 // pred_check
      _
    $region15: #{tpu_custom_call.1} parent=1 // pred_check_branch
      %27 = sbr.rel (0) target = $region17
    $region16: #{tpu_custom_call.1} parent=1 // pred_region
      _
    $region17: #{tpu_custom_call.1} parent=1 // pred_fallthru
      _
    // Predicated region
    $region18: #{tpu_custom_call.1} parent=1 // pred_check
      _
    $region19: #{tpu_custom_call.1} parent=1 // pred_check_branch
      %29 = sbr.rel (0) target = $region21
    $region20: #{tpu_custom_call.1} parent=1 // pred_region
      _
    $region21: #{tpu_custom_call.1} parent=1 // pred_fallthru
      _
    // Predicated region
    $region22: #{tpu_custom_call.1} parent=1 // pred_check
      _
    $region23: #{tpu_custom_call.1} parent=1 // pred_check_branch
      %31 = sbr.rel (0) target = $region25
    $region24: #{tpu_custom_call.1} parent=1 // pred_region
      _
    $region25: #{tpu_custom_call.1} parent=1 // pred_fallthru
      _
    // Predicated region
    $region26: #{tpu_custom_call.1} parent=1 // pred_check
      _
    $region27: #{tpu_custom_call.1} parent=1 // pred_check_branch
      %33 = sbr.rel (0) target = $region29
    $region28: #{tpu_custom_call.1} parent=1 // pred_region
      _
    $region29: #{tpu_custom_call.1} parent=1 // pred_fallthru
      _
    // Predicated region
    $region30: #{tpu_custom_call.1} parent=1 // pred_check
      _
    $region31: #{tpu_custom_call.1} parent=1 // pred_check_branch
      %35 = sbr.rel (0) target = $region33
    $region32: #{tpu_custom_call.1} parent=1 // pred_region
      _
    $region33: #{tpu_custom_call.1} parent=1 // pred_fallthru
      _
    // Predicated region
    $region34: #{tpu_custom_call.1} parent=1 // pred_check
      _
    $region35: #{tpu_custom_call.1} parent=1 // pred_check_branch
      %37 = sbr.rel (0) target = $region37
    $region36: #{tpu_custom_call.1} parent=1 // pred_region
      _
    $region37: #{tpu_custom_call.1} parent=1 // pred_fallthru
      _
    // Predicated region
    $region38: #{tpu_custom_call.1} parent=1 // pred_check
      _
    $region39: #{tpu_custom_call.1} parent=1 // pred_check_branch
      %39 = sbr.rel (0) target = $region41
    $region40: #{tpu_custom_call.1} parent=1 // pred_region
      _
    $region41: #{tpu_custom_call.1} parent=1 // pred_fallthru
      _
    // Predicated region
    $region42: #{tpu_custom_call.1} parent=1 // pred_check
      _
    $region43: #{tpu_custom_call.1} parent=1 // pred_check_branch
      %41 = sbr.rel (0) target = $region45
    $region44: #{tpu_custom_call.1} parent=1 // pred_region
      _
    $region45: #{tpu_custom_call.1} parent=1 // pred_fallthru
      _
    // Predicated region
    $region46: #{tpu_custom_call.1} parent=1 // pred_check
      _
    $region47: #{tpu_custom_call.1} parent=1 // pred_check_branch
      %43 = sbr.rel (0) target = $region49
    $region48: #{tpu_custom_call.1} parent=1 // pred_region
      _
    $region49: #{tpu_custom_call.1} parent=1 // pred_fallthru
      _
    // Predicated region
    $region50: #{tpu_custom_call.1} parent=1 // pred_check
      _
    $region51: #{tpu_custom_call.1} parent=1 // pred_check_branch
      %45 = sbr.rel (0) target = $region53
    $region52: #{tpu_custom_call.1} parent=1 // pred_region
      _
    $region53: #{tpu_custom_call.1} parent=1 // pred_fallthru
      _
    // Predicated region
    $region54: #{tpu_custom_call.1} parent=1 // pred_check
      _
    $region55: #{tpu_custom_call.1} parent=1 // pred_check_branch
      %47 = sbr.rel (0) target = $region57
    $region56: #{tpu_custom_call.1} parent=1 // pred_region
      _
    $region57: #{tpu_custom_call.1} parent=1 // pred_fallthru
      _
    %v48 = vld [vmem:[%s1] sm:$0x3]
    %v49 = vld [vmem:[%s2] sm:$0xff]
    %v50 = vld [vmem:[%s2 + $0x8] sm:$0xff]
    %v51 = vld [vmem:[%s2 + $0x10] sm:$0xff]
    %v52 = vld [vmem:[%s2 + $0x18] sm:$0xff]
    %v53 = vld [vmem:[%s2 + $0x20] sm:$0xff]
    %v54 = vld [vmem:[%s2 + $0x28] sm:$0xff]
    %v55 = vld [vmem:[%s2 + $0x30] sm:$0xff]
    %v56 = vld [vmem:[%s2 + $0x38] sm:$0xff]
    %v57 = vld [vmem:[%s2 + $0x40] sm:$0xff]
    %v58 = vld [vmem:[%s2 + $0x48] sm:$0xff]
    %v59 = vld [vmem:[%s2 + $0x50] sm:$0xff]
    %v60 = vld [vmem:[%s2 + $0x58] sm:$0xff]
    %v61 = vld [vmem:[%s2 + $0x60] sm:$0x3f]
    %v62 = vld [vmem:[%s3] sm:$0x1]
    %v63 = vld [vmem:[%s4] sm:$0xff]
    %v64 = vld [vmem:[%s4 + $0x8] sm:$0xff]
    %v65 = vld [vmem:[%s4 + $0x10] sm:$0xff]
    %v66 = vld [vmem:[%s4 + $0x18] sm:$0xff]
    %v67 = vld [vmem:[%s5] sm:$0x1]
    %v68 = vld [vmem:[%s8] sm:$0xff]
    %v69 = vld [vmem:[%s8 + $0x8] sm:$0xff]
    %v70 = vld [vmem:[%s8 + $0x10] sm:$0xff]
    %v71 = vld [vmem:[%s8 + $0x18] sm:$0xff]
    %v72 = vld [vmem:[%s8 + $0x20] sm:$0xff]
    %v73 = vld [vmem:[%s8 + $0x28] sm:$0xff]
    %v74 = vld [vmem:[%s8 + $0x30] sm:$0xff]
    %v75 = vld [vmem:[%s8 + $0x38] sm:$0xff]
    %v76 = vld [vmem:[%s8 + $0x40] sm:$0xff]
    %v77 = vld [vmem:[%s8 + $0x48] sm:$0xff]
    %v78 = vld [vmem:[%s8 + $0x50] sm:$0xff]
    %v79 = vld [vmem:[%s8 + $0x58] sm:$0xff]
    %v80 = vld [vmem:[%s8 + $0x60] sm:$0x3f]
    %v81 = vld [vmem:[%s9] sm:$0x1]
    %v82 = vld [vmem:[%s10] sm:$0xff]
    %v83 = vld [vmem:[%s10 + $0x8] sm:$0xff]
    %v84 = vld [vmem:[%s10 + $0x10] sm:$0xff]
    %v85 = vld [vmem:[%s10 + $0x18] sm:$0xff]
    %v86 = vld [vmem:[%s10 + $0x20] sm:$0xff]
    %v87 = vld [vmem:[%s10 + $0x28] sm:$0xff]
    %v88 = vld [vmem:[%s10 + $0x30] sm:$0xff]
    %v89 = vld [vmem:[%s10 + $0x38] sm:$0xff]
    %v90 = vld [vmem:[%s11] sm:$0x1]
    %v91 = vld [vmem:[%s6] sm:$0x1]
    %v92 = vld [vmem:[%s7] sm:$0x1]
    %v93 = vld [vmem:[%s12] sm:$0x1]
    %v94 = vld [vmem:[%s13] sm:$0x1]
    %v95 = vld [vmem:[%s0] sm:$0xff]
    %v97 = vperm.slane %v62, 0
    %vm99 = vcmask 834560
    %v101 = vsel %vm99, %v95, 0
    %vm103 = vcmask 1045504
    %v105 = vsel %vm103, %v61, 0
    %107 = vmatpush.msra.mxu0 0.0
    %108 = vmatpush.msra.mxu0 0.0
    %109 = vmatpush.msra.mxu0 0.0
    %110 = vmatpush.msra.mxu0 %v105
    %111 = vmatpush.msra.mxu0 %v60
    %112 = vmatpush.msra.mxu0 %v59
    %113 = vmatpush.msra.mxu0 %v58
    %114 = vmatpush.msra.mxu0 %v57
    %115 = vmatpush.msra.mxu0 %v56
    %116 = vmatpush.msra.mxu0 %v55
    %117 = vmatpush.msra.mxu0 %v54
    %118 = vmatpush.msra.mxu0 %v53
    %119 = vmatpush.msra.mxu0 %v52
    %120 = vmatpush.msra.mxu0 %v51
    %121 = vmatpush.msra.mxu0 %v50
    %122 = vmatpush.msra.mxu0 %v49
    %123 = vmatmul.f32.gmra.mxu0 %v101
    %v124 = vpop.f32.mrf.mxu0
    %v125 = vadd.f32 %v97, %v124
    %126 = vdwg.mxu0
    %128 = vrot.lane.b32.xlu0 %v125, 96
    %v129 = vpop.permute.xlu0 %128
    %vm130 = vcmask 130048
    %v131 = vsel %vm130, %v125, 0
    %v133 = vsel %vm130, %v129, 0
    %135 = vmatpush.xpose.msra.mxu0 0.0
    %136 = vmatpush.xpose.msra.mxu0 0.0
    %137 = vmatpush.xpose.msra.mxu0 0.0
    %138 = vmatpush.xpose.msra.mxu0 0.0
    %139 = vmatpush.xpose.msra.mxu0 0.0
    %140 = vmatpush.xpose.msra.mxu0 0.0
    %141 = vmatpush.xpose.msra.mxu0 0.0
    %142 = vmatpush.xpose.msra.mxu0 0.0
    %143 = vmatpush.xpose.msra.mxu0 0.0
    %144 = vmatpush.xpose.msra.mxu0 0.0
    %145 = vmatpush.xpose.msra.mxu0 0.0
    %146 = vmatpush.xpose.msra.mxu0 0.0
    %147 = vmatpush.xpose.msra.mxu0 0.0
    %148 = vmatpush.xpose.msra.mxu0 0.0
    %149 = vmatpush.xpose.msra.mxu0 0.0
    %150 = vmatpush.xpose.msra.mxu0 %v133
    %151 = vmatmul.f32.gmra.mxu0 %v131
    %v152 = vpop.f32.mrf.mxu0
    %v153 = vadd.f32 0.0, %v152
    %154 = vdwg.mxu0
    %v155 = vmul.f32 %v153, 0.25
    %vm156 = vcmp.gt.f32.partialorder %v48, 0.5
    %v157 = vsel %vm156, 1, 0
    %v158 = vperm.slane %v157, 0
    %vm159 = vcmp.eq.s32.totalorder %v158, 1
    %v160 = vsel %vm159, %v155, -1e+09
    %vm161 = vcmask 64512
    %v162 = vsel %vm161, %v160, -inf
    %163 = vmax.xlane.f32.xlu0 %v162
    %v164 = vpop.xlane.xlu0 %163
    %v165 = vsub.f32 %v160, %v164
    %v166 = vmul.f32 %v165, 1.442695
    %v167 = vpow.pop %v166
    %v168 = vsel %vm161, %v167, 0.0
    %169 = vadd.xlane.f32.xlu0 %v168
    %v170 = vpop.xlane.xlu0 %169
    %v171 = vrcp.pop %v170
    %v172 = vmul.f32 %v167, %v171
    %173 = vrot.lane.b32.xlu0 %v125, 64
    %v174 = vpop.permute.xlu0 %173
    %v177 = vsel %vm161, %v172, 0
    %179 = vmatpush.msra.mxu0 0.0
    %180 = vmatpush.msra.mxu0 0.0
    %181 = vmatpush.msra.mxu0 0.0
    %182 = vmatpush.msra.mxu0 0.0
    %183 = vmatpush.msra.mxu0 0.0
    %184 = vmatpush.msra.mxu0 0.0
    %185 = vmatpush.msra.mxu0 0.0
    %186 = vmatpush.msra.mxu0 0.0
    %187 = vmatpush.msra.mxu0 0.0
    %188 = vmatpush.msra.mxu0 0.0
    %189 = vmatpush.msra.mxu0 0.0
    %190 = vmatpush.msra.mxu0 0.0
    %191 = vmatpush.msra.mxu0 0.0
    %192 = vmatpush.msra.mxu0 0.0
    %193 = vmatpush.msra.mxu0 0.0
    %194 = vmatpush.msra.mxu0 %v174
    %195 = vmatmul.f32.gmra.mxu0 %v177
    %v196 = vpop.f32.mrf.mxu0
    %v197 = vadd.f32 0.0, %v196
    %198 = vdwg.mxu0
    %199 = vrot.lane.b32.xlu0 %v125, 112
    %v200 = vpop.permute.xlu0 %199
    %201 = vrot.lane.b32.xlu0 %v125, 80
    %v202 = vpop.permute.xlu0 %201
    %v203 = vsel %vm130, %v200, 0
    %v205 = vsel %vm130, %v202, 0
    %207 = vmatpush.xpose.msra.mxu0 0.0
    %208 = vmatpush.xpose.msra.mxu0 0.0
    %209 = vmatpush.xpose.msra.mxu0 0.0
    %210 = vmatpush.xpose.msra.mxu0 0.0
    %211 = vmatpush.xpose.msra.mxu0 0.0
    %212 = vmatpush.xpose.msra.mxu0 0.0
    %213 = vmatpush.xpose.msra.mxu0 0.0
    %214 = vmatpush.xpose.msra.mxu0 0.0
    %215 = vmatpush.xpose.msra.mxu0 0.0
    %216 = vmatpush.xpose.msra.mxu0 0.0
    %217 = vmatpush.xpose.msra.mxu0 0.0
    %218 = vmatpush.xpose.msra.mxu0 0.0
    %219 = vmatpush.xpose.msra.mxu0 0.0
    %220 = vmatpush.xpose.msra.mxu0 0.0
    %221 = vmatpush.xpose.msra.mxu0 0.0
    %222 = vmatpush.xpose.msra.mxu0 %v205
    %223 = vmatmul.f32.gmra.mxu0 %v203
    %v224 = vpop.f32.mrf.mxu0
    %v225 = vadd.f32 0.0, %v224
    %226 = vdwg.mxu0
    %v227 = vmul.f32 %v225, 0.25
    %v228 = vsel %vm159, %v227, -1e+09
    %v229 = vsel %vm161, %v228, -inf
    %230 = vmax.xlane.f32.xlu0 %v229
    %v231 = vpop.xlane.xlu0 %230
    %v232 = vsub.f32 %v228, %v231
    %v233 = vmul.f32 %v232, 1.442695
    %v234 = vpow.pop %v233
    %v235 = vsel %vm161, %v234, 0.0
    %236 = vadd.xlane.f32.xlu0 %v235
    %v237 = vpop.xlane.xlu0 %236
    %v238 = vrcp.pop %v237
    %v239 = vmul.f32 %v234, %v238
    %240 = vrot.lane.b32.xlu0 %v125, 48
    %v241 = vpop.permute.xlu0 %240
    %v244 = vsel %vm161, %v239, 0
    %246 = vmatpush.msra.mxu0 0.0
    %247 = vmatpush.msra.mxu0 0.0
    %248 = vmatpush.msra.mxu0 0.0
    %249 = vmatpush.msra.mxu0 0.0
    %250 = vmatpush.msra.mxu0 0.0
    %251 = vmatpush.msra.mxu0 0.0
    %252 = vmatpush.msra.mxu0 0.0
    %253 = vmatpush.msra.mxu0 0.0
    %254 = vmatpush.msra.mxu0 0.0
    %255 = vmatpush.msra.mxu0 0.0
    %256 = vmatpush.msra.mxu0 0.0
    %257 = vmatpush.msra.mxu0 0.0
    %258 = vmatpush.msra.mxu0 0.0
    %259 = vmatpush.msra.mxu0 0.0
    %260 = vmatpush.msra.mxu0 0.0
    %261 = vmatpush.msra.mxu0 %v241
    %262 = vmatmul.f32.gmra.mxu0 %v244
    %v263 = vpop.f32.mrf.mxu0
    %v264 = vadd.f32 0.0, %v263
    %265 = vdwg.mxu0
    %v267 = vsel %vm130, %v264, 0
    %269 = vmatpush.msra.mxu0 0.0
    %270 = vmatpush.msra.mxu0 0.0
    %271 = vmatpush.msra.mxu0 0.0
    %272 = vmatpush.msra.mxu0 0.0
    %273 = vmatpush.msra.mxu0 0.0
    %274 = vmatpush.msra.mxu0 0.0
    %275 = vmatpush.msra.mxu0 0.0
    %276 = vmatpush.msra.mxu0 0.0
    %277 = vmatpush.msra.mxu0 0.0
    %278 = vmatpush.msra.mxu0 0.0
    %279 = vmatpush.msra.mxu0 0.0
    %280 = vmatpush.msra.mxu0 0.0
    %281 = vmatpush.msra.mxu0 0.0
    %282 = vmatpush.msra.mxu0 0.0
    %283 = vmatpush.msra.mxu0 %v66
    %284 = vmatpush.msra.mxu0 %v65
    %285 = vmatmul.f32.gmra.mxu0 %v267
    %v286 = vpop.f32.mrf.mxu0
    %v287 = vadd.f32 0.0, %v286
    %288 = vdwg.mxu0
    %v290 = vsel %vm130, %v197, 0
    %292 = vmatpush.msra.mxu0 0.0
    %293 = vmatpush.msra.mxu0 0.0
    %294 = vmatpush.msra.mxu0 0.0
    %295 = vmatpush.msra.mxu0 0.0
    %296 = vmatpush.msra.mxu0 0.0
    %297 = vmatpush.msra.mxu0 0.0
    %298 = vmatpush.msra.mxu0 0.0
    %299 = vmatpush.msra.mxu0 0.0
    %300 = vmatpush.msra.mxu0 0.0
    %301 = vmatpush.msra.mxu0 0.0
    %302 = vmatpush.msra.mxu0 0.0
    %303 = vmatpush.msra.mxu0 0.0
    %304 = vmatpush.msra.mxu0 0.0
    %305 = vmatpush.msra.mxu0 0.0
    %306 = vmatpush.msra.mxu0 %v64
    %307 = vmatpush.msra.mxu0 %v63
    %308 = vmatmul.f32.gmra.mxu0 %v290
    %v309 = vpop.f32.mrf.mxu0
    %v310 = vadd.f32 %v287, %v309
    %311 = vdwg.mxu0
    %v313 = vperm.slane %v67, 0
    %v315 = vadd.f32 %v310, %v313
    %v316 = vadd.f32 %v315, %v95
    %v317 = vsel %vm99, %v316, 0.0
    %318 = vadd.xlane.f32.xlu0 %v317
    %v319 = vpop.xlane.xlu0 %318
    %v320 = vrcp.pop 102.0
    %v321 = vmul.f32 102.0, %v320
    %v322 = vsub.f32 1.0, %v321
    %v323 = vmul.f32 %v320, %v322
    %v324 = vadd.f32 %v320, %v323
    %vm325 = vweird.f32 %v320
    %v326 = vsel %vm325, %v320, %v324
    %v327 = vmul.f32 %v319, %v326
    %v328 = vsub.f32 %v316, %v327
    %v329 = vmul.f32 %v328, %v328
    %v330 = vsel %vm99, %v329, 0.0
    %331 = vadd.xlane.f32.xlu0 %v330
    %v332 = vpop.xlane.xlu0 %331
    %v333 = vmul.f32 %v332, %v326
    %v334 = vadd.f32 %v333, 1e-05
    %v335 = vrsqrt.pop %v334
    %v336 = vmul.f32 %v335, %v334
    %v337 = vmul.f32 %v336, %v335
    %v338 = vmul.f32 0.5, %v337
    %v339 = vsub.f32 1.5, %v338
    %v340 = vmul.f32 %v335, %v339
    %vm341 = vweird.f32 %v334
    %vm342 = vweird.f32 %v335
    %vm343 = vmor %vm341, %vm342
    %v344 = vsel %vm343, %v335, %v340
    %v345 = vmul.f32 %v328, %v344
    %v347 = vperm.slane %v91, 0
    %v349 = vmul.f32 %v345, %v347
    %v351 = vperm.slane %v92, 0
    %v353 = vadd.f32 %v349, %v351
    %v355 = vperm.slane %v81, 0
    %v358 = vsel %vm99, %v353, 0
    %v361 = vsel %vm103, %v80, 0
    %363 = vmatpush.msra.mxu0 0.0
    %364 = vmatpush.msra.mxu0 0.0
    %365 = vmatpush.msra.mxu0 0.0
    %366 = vmatpush.msra.mxu0 %v361
    %367 = vmatpush.msra.mxu0 %v79
    %368 = vmatpush.msra.mxu0 %v78
    %369 = vmatpush.msra.mxu0 %v77
    %370 = vmatpush.msra.mxu0 %v76
    %371 = vmatpush.msra.mxu0 %v75
    %372 = vmatpush.msra.mxu0 %v74
    %373 = vmatpush.msra.mxu0 %v73
    %374 = vmatpush.msra.mxu0 %v72
    %375 = vmatpush.msra.mxu0 %v71
    %376 = vmatpush.msra.mxu0 %v70
    %377 = vmatpush.msra.mxu0 %v69
    %378 = vmatpush.msra.mxu0 %v68
    %379 = vmatmul.f32.gmra.mxu0 %v358
    %v380 = vpop.f32.mrf.mxu0
    %v381 = vadd.f32 %v355, %v380
    %382 = vdwg.mxu0
    %v383 = vmax.f32 %v381, 0.0
    %v385 = vperm.slane %v90, 0
    %vm387 = vcmask 523264
    %v389 = vsel %vm387, %v383, 0
    %391 = vmatpush.msra.mxu0 0.0
    %392 = vmatpush.msra.mxu0 0.0
    %393 = vmatpush.msra.mxu0 0.0
    %394 = vmatpush.msra.mxu0 0.0
    %395 = vmatpush.msra.mxu0 0.0
    %396 = vmatpush.msra.mxu0 0.0
    %397 = vmatpush.msra.mxu0 0.0
    %398 = vmatpush.msra.mxu0 0.0
    %399 = vmatpush.msra.mxu0 %v89
    %400 = vmatpush.msra.mxu0 %v88
    %401 = vmatpush.msra.mxu0 %v87
    %402 = vmatpush.msra.mxu0 %v86
    %403 = vmatpush.msra.mxu0 %v85
    %404 = vmatpush.msra.mxu0 %v84
    %405 = vmatpush.msra.mxu0 %v83
    %406 = vmatpush.msra.mxu0 %v82
    %407 = vmatmul.f32.gmra.mxu0 %v389
    %v408 = vpop.f32.mrf.mxu0
    %v409 = vadd.f32 %v385, %v408
    %410 = vdwg.mxu0
    %v411 = vadd.f32 %v409, %v353
    %v412 = vsel %vm99, %v411, 0.0
    %413 = vadd.xlane.f32.xlu0 %v412
    %v414 = vpop.xlane.xlu0 %413
    %v415 = vmul.f32 %v414, %v326
    %v416 = vsub.f32 %v411, %v415
    %v417 = vmul.f32 %v416, %v416
    %v418 = vsel %vm99, %v417, 0.0
    %419 = vadd.xlane.f32.xlu0 %v418
    %v420 = vpop.xlane.xlu0 %419
    %v421 = vmul.f32 %v420, %v326
    %v422 = vadd.f32 %v421, 1e-05
    %v423 = vrsqrt.pop %v422
    %v424 = vmul.f32 %v423, %v422
    %v425 = vmul.f32 %v424, %v423
    %v426 = vmul.f32 0.5, %v425
    %v427 = vsub.f32 1.5, %v426
    %v428 = vmul.f32 %v423, %v427
    %vm429 = vweird.f32 %v422
    %vm430 = vweird.f32 %v423
    %vm431 = vmor %vm429, %vm430
    %v432 = vsel %vm431, %v423, %v428
    %v433 = vmul.f32 %v416, %v432
    %v435 = vperm.slane %v93, 0
    %v437 = vmul.f32 %v433, %v435
    %v439 = vperm.slane %v94, 0
    %v441 = vadd.f32 %v437, %v439
    %442 = vst.msk [vmem:[#allocation2] sm:$0xff] %vm99, %v441
    %v443 = vld [vmem:[%s0 + $0x8] sm:$0xff]
    %v445 = vsel %vm99, %v443, 0
    %447 = vmatpush.msra.mxu0 0.0
    %448 = vmatpush.msra.mxu0 0.0
    %449 = vmatpush.msra.mxu0 0.0
    %450 = vmatpush.msra.mxu0 %v105
    %451 = vmatpush.msra.mxu0 %v60
    %452 = vmatpush.msra.mxu0 %v59
    %453 = vmatpush.msra.mxu0 %v58
    %454 = vmatpush.msra.mxu0 %v57
    %455 = vmatpush.msra.mxu0 %v56
    %456 = vmatpush.msra.mxu0 %v55
    %457 = vmatpush.msra.mxu0 %v54
    %458 = vmatpush.msra.mxu0 %v53
    %459 = vmatpush.msra.mxu0 %v52
    %460 = vmatpush.msra.mxu0 %v51
    %461 = vmatpush.msra.mxu0 %v50
    %462 = vmatpush.msra.mxu0 %v49
    %463 = vmatmul.f32.gmra.mxu0 %v445
    %v464 = vpop.f32.mrf.mxu0
    %v465 = vadd.f32 %v97, %v464
    %466 = vdwg.mxu0
    %468 = vrot.lane.b32.xlu0 %v465, 96
    %v469 = vpop.permute.xlu0 %468
    %v470 = vsel %vm130, %v465, 0
    %v472 = vsel %vm130, %v469, 0
    %474 = vmatpush.xpose.msra.mxu0 0.0
    %475 = vmatpush.xpose.msra.mxu0 0.0
    %476 = vmatpush.xpose.msra.mxu0 0.0
    %477 = vmatpush.xpose.msra.mxu0 0.0
    %478 = vmatpush.xpose.msra.mxu0 0.0
    %479 = vmatpush.xpose.msra.mxu0 0.0
    %480 = vmatpush.xpose.msra.mxu0 0.0
    %481 = vmatpush.xpose.msra.mxu0 0.0
    %482 = vmatpush.xpose.msra.mxu0 0.0
    %483 = vmatpush.xpose.msra.mxu0 0.0
    %484 = vmatpush.xpose.msra.mxu0 0.0
    %485 = vmatpush.xpose.msra.mxu0 0.0
    %486 = vmatpush.xpose.msra.mxu0 0.0
    %487 = vmatpush.xpose.msra.mxu0 0.0
    %488 = vmatpush.xpose.msra.mxu0 0.0
    %489 = vmatpush.xpose.msra.mxu0 %v472
    %490 = vmatmul.f32.gmra.mxu0 %v470
    %v491 = vpop.f32.mrf.mxu0
    %v492 = vadd.f32 0.0, %v491
    %493 = vdwg.mxu0
    %v494 = vmul.f32 %v492, 0.25
    %v495 = vperm.slane %v157, 1
    %vm496 = vcmp.eq.s32.totalorder %v495, 1
    %v497 = vsel %vm496, %v494, -1e+09
    %v498 = vsel %vm161, %v497, -inf
    %499 = vmax.xlane.f32.xlu0 %v498
    %v500 = vpop.xlane.xlu0 %499
    %v501 = vsub.f32 %v497, %v500
    %v502 = vmul.f32 %v501, 1.442695
    %v503 = vpow.pop %v502
    %v504 = vsel %vm161, %v503, 0.0
    %505 = vadd.xlane.f32.xlu0 %v504
    %v506 = vpop.xlane.xlu0 %505
    %v507 = vrcp.pop %v506
    %v508 = vmul.f32 %v503, %v507
    %509 = vrot.lane.b32.xlu0 %v465, 64
    %v510 = vpop.permute.xlu0 %509
    %v513 = vsel %vm161, %v508, 0
    %515 = vmatpush.msra.mxu0 0.0
    %516 = vmatpush.msra.mxu0 0.0
    %517 = vmatpush.msra.mxu0 0.0
    %518 = vmatpush.msra.mxu0 0.0
    %519 = vmatpush.msra.mxu0 0.0
    %520 = vmatpush.msra.mxu0 0.0
    %521 = vmatpush.msra.mxu0 0.0
    %522 = vmatpush.msra.mxu0 0.0
    %523 = vmatpush.msra.mxu0 0.0
    %524 = vmatpush.msra.mxu0 0.0
    %525 = vmatpush.msra.mxu0 0.0
    %526 = vmatpush.msra.mxu0 0.0
    %527 = vmatpush.msra.mxu0 0.0
    %528 = vmatpush.msra.mxu0 0.0
    %529 = vmatpush.msra.mxu0 0.0
    %530 = vmatpush.msra.mxu0 %v510
    %531 = vmatmul.f32.gmra.mxu0 %v513
    %v532 = vpop.f32.mrf.mxu0
    %v533 = vadd.f32 0.0, %v532
    %534 = vdwg.mxu0
    %535 = vrot.lane.b32.xlu0 %v465, 112
    %v536 = vpop.permute.xlu0 %535
    %537 = vrot.lane.b32.xlu0 %v465, 80
    %v538 = vpop.permute.xlu0 %537
    %v539 = vsel %vm130, %v536, 0
    %v541 = vsel %vm130, %v538, 0
    %543 = vmatpush.xpose.msra.mxu0 0.0
    %544 = vmatpush.xpose.msra.mxu0 0.0
    %545 = vmatpush.xpose.msra.mxu0 0.0
    %546 = vmatpush.xpose.msra.mxu0 0.0
    %547 = vmatpush.xpose.msra.mxu0 0.0
    %548 = vmatpush.xpose.msra.mxu0 0.0
    %549 = vmatpush.xpose.msra.mxu0 0.0
    %550 = vmatpush.xpose.msra.mxu0 0.0
    %551 = vmatpush.xpose.msra.mxu0 0.0
    %552 = vmatpush.xpose.msra.mxu0 0.0
    %553 = vmatpush.xpose.msra.mxu0 0.0
    %554 = vmatpush.xpose.msra.mxu0 0.0
    %555 = vmatpush.xpose.msra.mxu0 0.0
    %556 = vmatpush.xpose.msra.mxu0 0.0
    %557 = vmatpush.xpose.msra.mxu0 0.0
    %558 = vmatpush.xpose.msra.mxu0 %v541
    %559 = vmatmul.f32.gmra.mxu0 %v539
    %v560 = vpop.f32.mrf.mxu0
    %v561 = vadd.f32 0.0, %v560
    %562 = vdwg.mxu0
    %v563 = vmul.f32 %v561, 0.25
    %v564 = vsel %vm496, %v563, -1e+09
    %v565 = vsel %vm161, %v564, -inf
    %566 = vmax.xlane.f32.xlu0 %v565
    %v567 = vpop.xlane.xlu0 %566
    %v568 = vsub.f32 %v564, %v567
    %v569 = vmul.f32 %v568, 1.442695
    %v570 = vpow.pop %v569
    %v571 = vsel %vm161, %v570, 0.0
    %572 = vadd.xlane.f32.xlu0 %v571
    %v573 = vpop.xlane.xlu0 %572
    %v574 = vrcp.pop %v573
    %v575 = vmul.f32 %v570, %v574
    %576 = vrot.lane.b32.xlu0 %v465, 48
    %v577 = vpop.permute.xlu0 %576
    %v580 = vsel %vm161, %v575, 0
    %582 = vmatpush.msra.mxu0 0.0
    %583 = vmatpush.msra.mxu0 0.0
    %584 = vmatpush.msra.mxu0 0.0
    %585 = vmatpush.msra.mxu0 0.0
    %586 = vmatpush.msra.mxu0 0.0
    %587 = vmatpush.msra.mxu0 0.0
    %588 = vmatpush.msra.mxu0 0.0
    %589 = vmatpush.msra.mxu0 0.0
    %590 = vmatpush.msra.mxu0 0.0
    %591 = vmatpush.msra.mxu0 0.0
    %592 = vmatpush.msra.mxu0 0.0
    %593 = vmatpush.msra.mxu0 0.0
    %594 = vmatpush.msra.mxu0 0.0
    %595 = vmatpush.msra.mxu0 0.0
    %596 = vmatpush.msra.mxu0 0.0
    %597 = vmatpush.msra.mxu0 %v577
    %598 = vmatmul.f32.gmra.mxu0 %v580
    %v599 = vpop.f32.mrf.mxu0
    %v600 = vadd.f32 0.0, %v599
    %601 = vdwg.mxu0
    %v603 = vsel %vm130, %v600, 0
    %605 = vmatpush.msra.mxu0 0.0
    %606 = vmatpush.msra.mxu0 0.0
    %607 = vmatpush.msra.mxu0 0.0
    %608 = vmatpush.msra.mxu0 0.0
    %609 = vmatpush.msra.mxu0 0.0
    %610 = vmatpush.msra.mxu0 0.0
    %611 = vmatpush.msra.mxu0 0.0
    %612 = vmatpush.msra.mxu0 0.0
    %613 = vmatpush.msra.mxu0 0.0
    %614 = vmatpush.msra.mxu0 0.0
    %615 = vmatpush.msra.mxu0 0.0
    %616 = vmatpush.msra.mxu0 0.0
    %617 = vmatpush.msra.mxu0 0.0
    %618 = vmatpush.msra.mxu0 0.0
    %619 = vmatpush.msra.mxu0 %v66
    %620 = vmatpush.msra.mxu0 %v65
    %621 = vmatmul.f32.gmra.mxu0 %v603
    %v622 = vpop.f32.mrf.mxu0
    %v623 = vadd.f32 0.0, %v622
    %624 = vdwg.mxu0
    %v626 = vsel %vm130, %v533, 0
    %628 = vmatpush.msra.mxu0 0.0
    %629 = vmatpush.msra.mxu0 0.0
    %630 = vmatpush.msra.mxu0 0.0
    %631 = vmatpush.msra.mxu0 0.0
    %632 = vmatpush.msra.mxu0 0.0
    %633 = vmatpush.msra.mxu0 0.0
    %634 = vmatpush.msra.mxu0 0.0
    %635 = vmatpush.msra.mxu0 0.0
    %636 = vmatpush.msra.mxu0 0.0
    %637 = vmatpush.msra.mxu0 0.0
    %638 = vmatpush.msra.mxu0 0.0
    %639 = vmatpush.msra.mxu0 0.0
    %640 = vmatpush.msra.mxu0 0.0
    %641 = vmatpush.msra.mxu0 0.0
    %642 = vmatpush.msra.mxu0 %v64
    %643 = vmatpush.msra.mxu0 %v63
    %644 = vmatmul.f32.gmra.mxu0 %v626
    %v645 = vpop.f32.mrf.mxu0
    %v646 = vadd.f32 %v623, %v645
    %647 = vdwg.mxu0
    %v648 = vadd.f32 %v646, %v313
    %v649 = vadd.f32 %v648, %v443
    %v650 = vsel %vm99, %v649, 0.0
    %651 = vadd.xlane.f32.xlu0 %v650
    %v652 = vpop.xlane.xlu0 %651
    %v653 = vmul.f32 %v652, %v326
    %v654 = vsub.f32 %v649, %v653
    %v655 = vmul.f32 %v654, %v654
    %v656 = vsel %vm99, %v655, 0.0
    %657 = vadd.xlane.f32.xlu0 %v656
    %v658 = vpop.xlane.xlu0 %657
    %v659 = vmul.f32 %v658, %v326
    %v660 = vadd.f32 %v659, 1e-05
    %v661 = vrsqrt.pop %v660
    %v662 = vmul.f32 %v661, %v660
    %v663 = vmul.f32 %v662, %v661
    %v664 = vmul.f32 0.5, %v663
    %v665 = vsub.f32 1.5, %v664
    %v666 = vmul.f32 %v661, %v665
    %vm667 = vweird.f32 %v660
    %vm668 = vweird.f32 %v661
    %vm669 = vmor %vm667, %vm668
    %v670 = vsel %vm669, %v661, %v666
    %v671 = vmul.f32 %v654, %v670
    %v672 = vmul.f32 %v671, %v347
    %v673 = vadd.f32 %v672, %v351
    %v675 = vsel %vm99, %v673, 0
    %677 = vmatpush.msra.mxu0 0.0
    %678 = vmatpush.msra.mxu0 0.0
    %679 = vmatpush.msra.mxu0 0.0
    %680 = vmatpush.msra.mxu0 %v361
    %681 = vmatpush.msra.mxu0 %v79
    %682 = vmatpush.msra.mxu0 %v78
    %683 = vmatpush.msra.mxu0 %v77
    %684 = vmatpush.msra.mxu0 %v76
    %685 = vmatpush.msra.mxu0 %v75
    %686 = vmatpush.msra.mxu0 %v74
    %687 = vmatpush.msra.mxu0 %v73
    %688 = vmatpush.msra.mxu0 %v72
    %689 = vmatpush.msra.mxu0 %v71
    %690 = vmatpush.msra.mxu0 %v70
    %691 = vmatpush.msra.mxu0 %v69
    %692 = vmatpush.msra.mxu0 %v68
    %693 = vmatmul.f32.gmra.mxu0 %v675
    %v694 = vpop.f32.mrf.mxu0
    %v695 = vadd.f32 %v355, %v694
    %696 = vdwg.mxu0
    %v697 = vmax.f32 %v695, 0.0
    %v699 = vsel %vm387, %v697, 0
    %701 = vmatpush.msra.mxu0 0.0
    %702 = vmatpush.msra.mxu0 0.0
    %703 = vmatpush.msra.mxu0 0.0
    %704 = vmatpush.msra.mxu0 0.0
    %705 = vmatpush.msra.mxu0 0.0
    %706 = vmatpush.msra.mxu0 0.0
    %707 = vmatpush.msra.mxu0 0.0
    %708 = vmatpush.msra.mxu0 0.0
    %709 = vmatpush.msra.mxu0 %v89
    %710 = vmatpush.msra.mxu0 %v88
    %711 = vmatpush.msra.mxu0 %v87
    %712 = vmatpush.msra.mxu0 %v86
    %713 = vmatpush.msra.mxu0 %v85
    %714 = vmatpush.msra.mxu0 %v84
    %715 = vmatpush.msra.mxu0 %v83
    %716 = vmatpush.msra.mxu0 %v82
    %717 = vmatmul.f32.gmra.mxu0 %v699
    %v718 = vpop.f32.mrf.mxu0
    %v719 = vadd.f32 %v385, %v718
    %720 = vdwg.mxu0
    %v721 = vadd.f32 %v719, %v673
    %v722 = vsel %vm99, %v721, 0.0
    %723 = vadd.xlane.f32.xlu0 %v722
    %v724 = vpop.xlane.xlu0 %723
    %v725 = vmul.f32 %v724, %v326
    %v726 = vsub.f32 %v721, %v725
    %v727 = vmul.f32 %v726, %v726
    %v728 = vsel %vm99, %v727, 0.0
    %729 = vadd.xlane.f32.xlu0 %v728
    %v730 = vpop.xlane.xlu0 %729
    %v731 = vmul.f32 %v730, %v326
    %v732 = vadd.f32 %v731, 1e-05
    %v733 = vrsqrt.pop %v732
    %v734 = vmul.f32 %v733, %v732
    %v735 = vmul.f32 %v734, %v733
    %v736 = vmul.f32 0.5, %v735
    %v737 = vsub.f32 1.5, %v736
    %v738 = vmul.f32 %v733, %v737
    %vm739 = vweird.f32 %v732
    %vm740 = vweird.f32 %v733
    %vm741 = vmor %vm739, %vm740
    %v742 = vsel %vm741, %v733, %v738
    %v743 = vmul.f32 %v726, %v742
    %v744 = vmul.f32 %v743, %v435
    %v745 = vadd.f32 %v744, %v439
    %746 = vst.msk [vmem:[#allocation2 + $0x8] sm:$0xff] %vm99, %v745
    // Predicated region
    $region58: #{tpu_custom_call.1} parent=1 // pred_check
      _
    $region59: #{tpu_custom_call.1} parent=1 // pred_check_branch
      %748 = sbr.rel (0) target = $region61
    $region60: #{tpu_custom_call.1} parent=1 // pred_region
      %750 = vsyncadd [#allocation3], 0
      %s751 = sshll.u32 [#allocation2], 4
      %s752 = int_to_ptr.vmem [resolvable:$true] %s751
      %s753 = sshll.u32 %s14, 4
      %s754 = int_to_ptr.hbm [resolvable:$true] %s753
      %759 = dma.vmem_to_hbm [thread:$0]  %s752, 256, %s754, [#allocation3], 128, 128, 8
    $region61: #{tpu_custom_call.1} parent=1 // pred_fallthru
      _
    // Predicated region
    $region62: #{tpu_custom_call.1} parent=1 // pred_check
      _
    $region63: #{tpu_custom_call.1} parent=1 // pred_check_branch
      %761 = sbr.rel (0) target = $region65
    $region64: #{tpu_custom_call.1} parent=1 // pred_region
      %763 = dma.done [#allocation3], 256
    $region65: #{tpu_custom_call.1} parent=1 // pred_fallthru
      _
    %764 = vsyncpa [#allocation3], 1

</llo_original>
